<compile_context>
chip_gen: v5e
topology: v5e:2x2
jax: 0.10.0
libtpu: 0.0.40
codegen_flags: <defaults>
</compile_context>

<pallas_src>
import functools

import jax
import jax.numpy as jnp
from jax.experimental import pallas as pl
from jax.experimental.pallas import tpu as pltpu

LANE = 128


def _round_up(n, m):
    return (n + m - 1) // m * m


def _leaky_relu(x, slope=0.2):
    return jnp.where(x > 0, x, slope * x)


def _sigmoid(x):
    # sigmoid(x) == 0.5 * tanh(0.5 * x) + 0.5 : a single EUP transcendental.
    return 0.5 * jnp.tanh(0.5 * x) + 0.5


# ---------------------------------------------------------------------------
# Kernel
# ---------------------------------------------------------------------------
def mlp_classifier_kernel(
    x_ref,                       # (TM, D)       bf16, batch tile
    w1_ref, b1_ref,              # Linear(D,256) + folded BN(256)
    w2_ref, b2_ref,              # Linear(256,128) + folded BN(128)
    wa1_ref, ba1_ref,            # attention Linear(128,128)
    wa2_ref, ba2_ref,            # attention Linear(128,128)
    wc1_ref, bc1_ref,            # classifier Linear(128,128) + folded BN(128)
    wc2_ref, bc2_ref,            # classifier Linear(128, 128-padded)
    out_ref,                     # (TM, num_classes) f32  <- un-padded store
):
    x = x_ref[...]                                     # bf16 operands for the MXU

    # ---- feature_net (BN folded into W/b; Dropout = identity in eval) ----
    h = jnp.dot(x, w1_ref[...], preferred_element_type=jnp.float32) + b1_ref[...]
    h = _leaky_relu(h)
    h = jnp.dot(h.astype(w2_ref.dtype), w2_ref[...],
                preferred_element_type=jnp.float32) + b2_ref[...]
    feat = _leaky_relu(h)                              # "features", f32 (TM, 128)
    feat_lp = feat.astype(wa1_ref.dtype)               # cast ONCE, reused twice

    # ---- attention gate ----
    a = jnp.dot(feat_lp, wa1_ref[...], preferred_element_type=jnp.float32) + ba1_ref[...]
    a = jnp.maximum(a, 0.0)                            # ReLU
    a = jnp.dot(a.astype(wa2_ref.dtype), wa2_ref[...],
                preferred_element_type=jnp.float32) + ba2_ref[...]
    a = _sigmoid(a)                                    # nn.Sigmoid inside attention
    a = _sigmoid(a)                                    # torch.sigmoid(...) in forward (double sigmoid, per spec)

    # weighted_features: bf16 multiply; result feeds the classifier matmul directly
    wf = feat_lp * a.astype(wa1_ref.dtype)

    # ---- classifier (BN folded) ----
    c = jnp.dot(wf, wc1_ref[...], preferred_element_type=jnp.float32) + bc1_ref[...]
    c = _leaky_relu(c)
    logits = jnp.dot(c.astype(wc2_ref.dtype), wc2_ref[...],
                     preferred_element_type=jnp.float32) + bc2_ref[...]

    # Slice off the lane-padded columns BEFORE the store: HBM writeback is
    # (TM, num_classes) f32, not (TM, 128) f32.
    out_ref[...] = logits[:, :out_ref.shape[1]].astype(out_ref.dtype)


# ---------------------------------------------------------------------------
# Parameter preprocessing (run ONCE at model-load time, zero per-call cost)
# ---------------------------------------------------------------------------
def _fold_bn_into_linear(w, b, bn, eps=1e-5):
    """y = BN(xW + b) == x(W*scale) + ((b - mean)*scale + beta)."""
    scale = bn["gamma"] / jnp.sqrt(bn["var"] + eps)
    w_f = w * scale[None, :]
    b_f = (b - bn["mean"][None, :]) * scale[None, :] + bn["beta"][None, :]
    return w_f, b_f


def prepare_params(params, compute_dtype=jnp.bfloat16):
    w1, b1 = _fold_bn_into_linear(params["w1"], params["b1"], params["bn1"])
    w2, b2 = _fold_bn_into_linear(params["w2"], params["b2"], params["bn2"])
    wc1, bc1 = _fold_bn_into_linear(params["wc1"], params["bc1"], params["bnc"])
    wa1, ba1 = params["wa1"], params["ba1"]
    wa2, ba2 = params["wa2"], params["ba2"]
    wc2, bc2 = params["wc2"], params["bc2"]

    # Keep wc2 lane-padded in VMEM (extra MXU columns are cheap); the kernel
    # slices the logits before the HBM store so the output stays un-padded.
    nc = wc2.shape[1]
    ncp = _round_up(nc, LANE)
    if ncp != nc:
        wc2 = jnp.pad(wc2, ((0, 0), (0, ncp - nc)))
        bc2 = jnp.pad(bc2, ((0, 0), (0, ncp - nc)))

    cast = lambda w: w.astype(compute_dtype)
    f32 = lambda b: b.astype(jnp.float32)
    return dict(
        w1=cast(w1), b1=f32(b1),
        w2=cast(w2), b2=f32(b2),
        wa1=cast(wa1), ba1=f32(ba1),
        wa2=cast(wa2), ba2=f32(ba2),
        wc1=cast(wc1), bc1=f32(bc1),
        wc2=cast(wc2), bc2=f32(bc2),
    )


# ---------------------------------------------------------------------------
# Pallas wrapper
# ---------------------------------------------------------------------------
def mlp_classifier_forward(x, p, *, num_classes, tm=1024, min_tiles=2,
                           vmem_limit_bytes=32 * 1024 * 1024):
    """Full MLPClassifier forward, batch-tiled over a 1-D grid.

    `p` must come from prepare_params (BN folded, bf16 weights, wc2 lane-padded).
    """
    B, D = x.shape
    assert p["w1"].shape[0] == D, "input feature dim mismatch"

    # Batch tile: large enough to amortize ~0.35us/grid-step, but keep at least
    # `min_tiles` tiles so the "parallel" axis feeds both TensorCores on v7x.
    TM = max(8, min(tm, _round_up(pl.cdiv(B, min_tiles), 8)))
    grid_b = pl.cdiv(B, TM)
    Bp = grid_b * TM

    xq = x.astype(p["w1"].dtype)                  # bf16 input stream (no D padding)
    if Bp != B:
        xq = jnp.zeros((Bp, D), xq.dtype).at[:B].set(xq)

    weight_args = (
        p["w1"], p["b1"], p["w2"], p["b2"],
        p["wa1"], p["ba1"], p["wa2"], p["ba2"],
        p["wc1"], p["bc1"], p["wc2"], p["bc2"],
    )

    def resident(a):
        # Constant block index -> tile never changes; stays VMEM resident.
        # TODO(synk): pipeline_mode=pl.Buffered(1) would drop the redundant second
        # buffer for these (~0.25 MiB total); left at the default for portability.
        return pl.BlockSpec(a.shape, lambda i: (0, 0))

    out = pl.pallas_call(
        mlp_classifier_kernel,
        out_shape=jax.ShapeDtypeStruct((Bp, num_classes), jnp.float32),
        grid=(grid_b,),
        in_specs=[pl.BlockSpec((TM, D), lambda i: (i, 0))]
                 + [resident(a) for a in weight_args],
        out_specs=pl.BlockSpec((TM, num_classes), lambda i: (i, 0)),
        compiler_params=pltpu.CompilerParams(
            dimension_semantics=("parallel",),        # megacore sharding on v7x
            vmem_limit_bytes=vmem_limit_bytes,
        ),
    )(xq, *weight_args)

    return out[:B]


# ---------------------------------------------------------------------------
# Synthetic parameters + references
# ---------------------------------------------------------------------------
def init_params(key, input_dim, num_classes=1):
    ks = jax.random.split(key, 16)

    def lin(kw, kb, fan_in, fan_out):
        # Weight stored (in, out); PyTorch stores (out, in) — transposed for x @ W.
        bound = 1.0 / jnp.sqrt(fan_in)
        w = jax.random.uniform(kw, (fan_in, fan_out), jnp.float32, -bound, bound)
        b = jax.random.uniform(kb, (1, fan_out), jnp.float32, -bound, bound)
        return w, b

    def bn(kg, kb, n):
        gamma = 1.0 + 0.1 * jax.random.normal(kg, (n,), jnp.float32)
        beta = 0.1 * jax.random.normal(kb, (n,), jnp.float32)
        mean = 0.05 * jax.random.normal(jax.random.fold_in(kg, 1), (n,), jnp.float32)
        var = jnp.abs(1.0 + 0.1 * jax.random.normal(jax.random.fold_in(kb, 1), (n,), jnp.float32))
        return dict(gamma=gamma, beta=beta, mean=mean, var=var)

    w1, b1 = lin(ks[0], ks[1], input_dim, 256)
    bn1 = bn(ks[2], ks[3], 256)
    w2, b2 = lin(ks[4], ks[5], 256, 128)
    bn2 = bn(ks[6], ks[7], 128)
    wa1, ba1 = lin(ks[8], ks[9], 128, 128)
    wa2, ba2 = lin(ks[10], ks[11], 128, 128)
    wc1, bc1 = lin(ks[12], ks[13], 128, 128)
    bnc = bn(jax.random.fold_in(ks[14], 0), jax.random.fold_in(ks[14], 1), 128)
    wc2, bc2 = lin(jax.random.fold_in(ks[15], 0), jax.random.fold_in(ks[15], 1), 128, num_classes)

    return dict(w1=w1, b1=b1, bn1=bn1, w2=w2, b2=b2, bn2=bn2,
                wa1=wa1, ba1=ba1, wa2=wa2, ba2=ba2,
                wc1=wc1, bc1=bc1, bnc=bnc, wc2=wc2, bc2=bc2)


def reference_forward(x, params):
    """Pure-JAX f32 reference of the PyTorch eval-mode forward (BN unfolded)."""
    dot = functools.partial(jnp.dot, precision=jax.lax.Precision.HIGHEST)

    def bn(z, b, eps=1e-5):
        scale = b["gamma"] / jnp.sqrt(b["var"] + eps)
        return (z - b["mean"]) * scale + b["beta"]

    h = _leaky_relu(bn(dot(x, params["w1"]) + params["b1"], params["bn1"]))
    feat = _leaky_relu(bn(dot(h, params["w2"]) + params["b2"], params["bn2"]))
    a = jnp.maximum(dot(feat, params["wa1"]) + params["ba1"], 0.0)
    a = jax.nn.sigmoid(jax.nn.sigmoid(dot(a, params["wa2"]) + params["ba2"]))
    wf = feat * a
    c = _leaky_relu(bn(dot(wf, params["wc1"]) + params["bc1"], params["bnc"]))
    return dot(c, params["wc2"]) + params["bc2"]


def reference_forward_quantized(x, params, compute_dtype=jnp.bfloat16):
    """Mirror of the kernel arithmetic (folded BN, bf16 operands, f32 acc, bf16 wf)."""
    p = prepare_params(params, compute_dtype=compute_dtype)
    nc = params["wc2"].shape[1]
    hp = functools.partial(jnp.dot, precision=jax.lax.Precision.HIGHEST)
    f32 = lambda v: v.astype(jnp.float32)
    q = lambda v: v.astype(compute_dtype)
    qdot = lambda a, w: hp(f32(q(a)), f32(w))          # w already bf16

    h = _leaky_relu(qdot(x, p["w1"]) + p["b1"])
    feat = _leaky_relu(qdot(h, p["w2"]) + p["b2"])
    feat_lp = q(feat)
    a = jnp.maximum(hp(f32(feat_lp), f32(p["wa1"])) + p["ba1"], 0.0)
    a = _sigmoid(_sigmoid(qdot(a, p["wa2"]) + p["ba2"]))
    wf = feat_lp * q(a)                                # bf16 multiply, as in kernel
    c = _leaky_relu(hp(f32(wf), f32(p["wc1"])) + p["bc1"])
    logits = hp(f32(q(c)), f32(p["wc2"])) + p["bc2"]
    return logits[:, :nc]


if __name__ == "__main__":
    key = jax.random.PRNGKey(0)
    kx, kp = jax.random.split(key)

    batch = 500            # not a tile multiple -> exercises batch padding + slicing
    input_dim = 64         # synthetic stand-in for the MFCC+spec+CQT feature vector
    num_classes = 1

    x = jax.random.normal(kx, (batch, input_dim), jnp.float32)
    params = init_params(kp, input_dim, num_classes)

    prepared = prepare_params(params)   # BN folding / casts done ONCE, not per call
    fwd = jax.jit(functools.partial(mlp_classifier_forward, num_classes=num_classes))

    logits = jax.block_until_ready(fwd(x, prepared))
    assert logits.shape == (batch, num_classes)

    # Tight check vs. a reference that mirrors the kernel's bf16/f32 arithmetic.
    ref_q = reference_forward_quantized(x, params)
    assert jnp.allclose(logits, ref_q, atol=2e-3, rtol=2e-3), "mismatch vs quantized reference"

    # Loose check vs. the full-f32, unfolded-BN PyTorch-semantics reference.
    ref = reference_forward(x, params)
    assert jnp.allclose(logits, ref, atol=5e-2, rtol=5e-2), "mismatch vs f32 reference"

    print("KERNEL_OK")
</pallas_src>

<mosaic_0001>
module attributes {stable_mosaic.version = 11 : i64} {
  func.func @mlp_classifier_kernel(%arg0: i32, %arg1: memref<256x64xbf16, #tpu.memory_space<vmem>>, %arg2: memref<64x256xbf16, #tpu.memory_space<vmem>>, %arg3: memref<1x256xf32, #tpu.memory_space<vmem>>, %arg4: memref<256x128xbf16, #tpu.memory_space<vmem>>, %arg5: memref<1x128xf32, #tpu.memory_space<vmem>>, %arg6: memref<128x128xbf16, #tpu.memory_space<vmem>>, %arg7: memref<1x128xf32, #tpu.memory_space<vmem>>, %arg8: memref<128x128xbf16, #tpu.memory_space<vmem>>, %arg9: memref<1x128xf32, #tpu.memory_space<vmem>>, %arg10: memref<128x128xbf16, #tpu.memory_space<vmem>>, %arg11: memref<1x128xf32, #tpu.memory_space<vmem>>, %arg12: memref<128x128xbf16, #tpu.memory_space<vmem>>, %arg13: memref<1x128xf32, #tpu.memory_space<vmem>>, %arg14: memref<256x1xf32, #tpu.memory_space<vmem>>) attributes {dimension_semantics = [#tpu.dimension_semantics<parallel>], iteration_bounds = array<i64: 2>, scalar_prefetch = 0 : i64, scratch_operands = 0 : i64, tpu.core_type = #tpu.core_type<tc>, window_params = [{transform_indices = @transform_0, window_bounds = array<i64: 256, 64>}, {pipeline_mode = #tpu.pipeline_mode<synchronous>, transform_indices = @transform_1, window_bounds = array<i64: 64, 256>}, {pipeline_mode = #tpu.pipeline_mode<synchronous>, transform_indices = @transform_2, window_bounds = array<i64: 1, 256>}, {pipeline_mode = #tpu.pipeline_mode<synchronous>, transform_indices = @transform_3, window_bounds = array<i64: 256, 128>}, {pipeline_mode = #tpu.pipeline_mode<synchronous>, transform_indices = @transform_4, window_bounds = array<i64: 1, 128>}, {pipeline_mode = #tpu.pipeline_mode<synchronous>, transform_indices = @transform_5, window_bounds = array<i64: 128, 128>}, {pipeline_mode = #tpu.pipeline_mode<synchronous>, transform_indices = @transform_6, window_bounds = array<i64: 1, 128>}, {pipeline_mode = #tpu.pipeline_mode<synchronous>, transform_indices = @transform_7, window_bounds = array<i64: 128, 128>}, {pipeline_mode = #tpu.pipeline_mode<synchronous>, transform_indices = @transform_8, window_bounds = array<i64: 1, 128>}, {pipeline_mode = #tpu.pipeline_mode<synchronous>, transform_indices = @transform_9, window_bounds = array<i64: 128, 128>}, {pipeline_mode = #tpu.pipeline_mode<synchronous>, transform_indices = @transform_10, window_bounds = array<i64: 1, 128>}, {pipeline_mode = #tpu.pipeline_mode<synchronous>, transform_indices = @transform_11, window_bounds = array<i64: 128, 128>}, {pipeline_mode = #tpu.pipeline_mode<synchronous>, transform_indices = @transform_12, window_bounds = array<i64: 1, 128>}, {transform_indices = @transform_13, window_bounds = array<i64: 256, 1>}]} {
    %c0 = arith.constant 0 : index
    %c0_0 = arith.constant 0 : index
    %0 = vector.load %arg1[%c0, %c0_0] : memref<256x64xbf16, #tpu.memory_space<vmem>>, vector<256x64xbf16>
    %c0_1 = arith.constant 0 : index
    %c0_2 = arith.constant 0 : index
    %1 = vector.load %arg2[%c0_1, %c0_2] : memref<64x256xbf16, #tpu.memory_space<vmem>>, vector<64x256xbf16>
    %cst = arith.constant dense<0.000000e+00> : vector<256x256xf32>
    %2 = tpu.matmul %0, %1, %cst {dimension_numbers = #tpu.dot_dimension_numbers<[1], [0], [0], [1], [0, 0, 1, 1], [], []>} : vector<256x64xbf16>, vector<64x256xbf16>, vector<256x256xf32> -> vector<256x256xf32>
    %c0_3 = arith.constant 0 : index
    %c0_4 = arith.constant 0 : index
    %3 = vector.load %arg3[%c0_3, %c0_4] : memref<1x256xf32, #tpu.memory_space<vmem>>, vector<1x256xf32>
    %4 = vector.broadcast %3 : vector<1x256xf32> to vector<256x256xf32>
    %5 = arith.addf %2, %4 : vector<256x256xf32>
    %cst_5 = arith.constant 0.000000e+00 : f32
    %6 = vector.broadcast %cst_5 : f32 to vector<256x256xf32>
    %7 = arith.cmpf ogt, %5, %6 : vector<256x256xf32>
    %cst_6 = arith.constant 2.000000e-01 : f32
    %8 = vector.broadcast %cst_6 : f32 to vector<256x256xf32>
    %9 = arith.mulf %8, %5 : vector<256x256xf32>
    %10 = arith.select %7, %5, %9 : vector<256x256xi1>, vector<256x256xf32>
    %11 = arith.truncf %10 : vector<256x256xf32> to vector<256x256xbf16>
    %c0_7 = arith.constant 0 : index
    %c0_8 = arith.constant 0 : index
    %12 = vector.load %arg4[%c0_7, %c0_8] : memref<256x128xbf16, #tpu.memory_space<vmem>>, vector<256x128xbf16>
    %cst_9 = arith.constant dense<0.000000e+00> : vector<256x128xf32>
    %13 = tpu.matmul %11, %12, %cst_9 {dimension_numbers = #tpu.dot_dimension_numbers<[1], [0], [0], [1], [0, 0, 1, 1], [], []>} : vector<256x256xbf16>, vector<256x128xbf16>, vector<256x128xf32> -> vector<256x128xf32>
    %c0_10 = arith.constant 0 : index
    %c0_11 = arith.constant 0 : index
    %14 = vector.load %arg5[%c0_10, %c0_11] : memref<1x128xf32, #tpu.memory_space<vmem>>, vector<1x128xf32>
    %15 = vector.broadcast %14 : vector<1x128xf32> to vector<256x128xf32>
    %16 = arith.addf %13, %15 : vector<256x128xf32>
    %cst_12 = arith.constant 0.000000e+00 : f32
    %17 = vector.broadcast %cst_12 : f32 to vector<256x128xf32>
    %18 = arith.cmpf ogt, %16, %17 : vector<256x128xf32>
    %cst_13 = arith.constant 2.000000e-01 : f32
    %19 = vector.broadcast %cst_13 : f32 to vector<256x128xf32>
    %20 = arith.mulf %19, %16 : vector<256x128xf32>
    %21 = arith.select %18, %16, %20 : vector<256x128xi1>, vector<256x128xf32>
    %22 = arith.truncf %21 : vector<256x128xf32> to vector<256x128xbf16>
    %c0_14 = arith.constant 0 : index
    %c0_15 = arith.constant 0 : index
    %23 = vector.load %arg6[%c0_14, %c0_15] : memref<128x128xbf16, #tpu.memory_space<vmem>>, vector<128x128xbf16>
    %cst_16 = arith.constant dense<0.000000e+00> : vector<256x128xf32>
    %24 = tpu.matmul %22, %23, %cst_16 {dimension_numbers = #tpu.dot_dimension_numbers<[1], [0], [0], [1], [0, 0, 1, 1], [], []>} : vector<256x128xbf16>, vector<128x128xbf16>, vector<256x128xf32> -> vector<256x128xf32>
    %c0_17 = arith.constant 0 : index
    %c0_18 = arith.constant 0 : index
    %25 = vector.load %arg7[%c0_17, %c0_18] : memref<1x128xf32, #tpu.memory_space<vmem>>, vector<1x128xf32>
    %26 = vector.broadcast %25 : vector<1x128xf32> to vector<256x128xf32>
    %27 = arith.addf %24, %26 : vector<256x128xf32>
    %cst_19 = arith.constant 0.000000e+00 : f32
    %28 = vector.broadcast %cst_19 : f32 to vector<256x128xf32>
    %29 = arith.maximumf %27, %28 : vector<256x128xf32>
    %30 = arith.truncf %29 : vector<256x128xf32> to vector<256x128xbf16>
    %c0_20 = arith.constant 0 : index
    %c0_21 = arith.constant 0 : index
    %31 = vector.load %arg8[%c0_20, %c0_21] : memref<128x128xbf16, #tpu.memory_space<vmem>>, vector<128x128xbf16>
    %cst_22 = arith.constant dense<0.000000e+00> : vector<256x128xf32>
    %32 = tpu.matmul %30, %31, %cst_22 {dimension_numbers = #tpu.dot_dimension_numbers<[1], [0], [0], [1], [0, 0, 1, 1], [], []>} : vector<256x128xbf16>, vector<128x128xbf16>, vector<256x128xf32> -> vector<256x128xf32>
    %c0_23 = arith.constant 0 : index
    %c0_24 = arith.constant 0 : index
    %33 = vector.load %arg9[%c0_23, %c0_24] : memref<1x128xf32, #tpu.memory_space<vmem>>, vector<1x128xf32>
    %34 = vector.broadcast %33 : vector<1x128xf32> to vector<256x128xf32>
    %35 = arith.addf %32, %34 : vector<256x128xf32>
    %cst_25 = arith.constant 5.000000e-01 : f32
    %36 = vector.broadcast %cst_25 : f32 to vector<256x128xf32>
    %37 = arith.mulf %36, %35 : vector<256x128xf32>
    %38 = math.tanh %37 : vector<256x128xf32>
    %cst_26 = arith.constant 5.000000e-01 : f32
    %39 = vector.broadcast %cst_26 : f32 to vector<256x128xf32>
    %40 = arith.mulf %39, %38 : vector<256x128xf32>
    %cst_27 = arith.constant 5.000000e-01 : f32
    %41 = vector.broadcast %cst_27 : f32 to vector<256x128xf32>
    %42 = arith.addf %40, %41 : vector<256x128xf32>
    %cst_28 = arith.constant 5.000000e-01 : f32
    %43 = vector.broadcast %cst_28 : f32 to vector<256x128xf32>
    %44 = arith.mulf %43, %42 : vector<256x128xf32>
    %45 = math.tanh %44 : vector<256x128xf32>
    %cst_29 = arith.constant 5.000000e-01 : f32
    %46 = vector.broadcast %cst_29 : f32 to vector<256x128xf32>
    %47 = arith.mulf %46, %45 : vector<256x128xf32>
    %cst_30 = arith.constant 5.000000e-01 : f32
    %48 = vector.broadcast %cst_30 : f32 to vector<256x128xf32>
    %49 = arith.addf %47, %48 : vector<256x128xf32>
    %50 = arith.truncf %49 : vector<256x128xf32> to vector<256x128xbf16>
    %51 = arith.mulf %22, %50 : vector<256x128xbf16>
    %c0_31 = arith.constant 0 : index
    %c0_32 = arith.constant 0 : index
    %52 = vector.load %arg10[%c0_31, %c0_32] : memref<128x128xbf16, #tpu.memory_space<vmem>>, vector<128x128xbf16>
    %cst_33 = arith.constant dense<0.000000e+00> : vector<256x128xf32>
    %53 = tpu.matmul %51, %52, %cst_33 {dimension_numbers = #tpu.dot_dimension_numbers<[1], [0], [0], [1], [0, 0, 1, 1], [], []>} : vector<256x128xbf16>, vector<128x128xbf16>, vector<256x128xf32> -> vector<256x128xf32>
    %c0_34 = arith.constant 0 : index
    %c0_35 = arith.constant 0 : index
    %54 = vector.load %arg11[%c0_34, %c0_35] : memref<1x128xf32, #tpu.memory_space<vmem>>, vector<1x128xf32>
    %55 = vector.broadcast %54 : vector<1x128xf32> to vector<256x128xf32>
    %56 = arith.addf %53, %55 : vector<256x128xf32>
    %cst_36 = arith.constant 0.000000e+00 : f32
    %57 = vector.broadcast %cst_36 : f32 to vector<256x128xf32>
    %58 = arith.cmpf ogt, %56, %57 : vector<256x128xf32>
    %cst_37 = arith.constant 2.000000e-01 : f32
    %59 = vector.broadcast %cst_37 : f32 to vector<256x128xf32>
    %60 = arith.mulf %59, %56 : vector<256x128xf32>
    %61 = arith.select %58, %56, %60 : vector<256x128xi1>, vector<256x128xf32>
    %62 = arith.truncf %61 : vector<256x128xf32> to vector<256x128xbf16>
    %c0_38 = arith.constant 0 : index
    %c0_39 = arith.constant 0 : index
    %63 = vector.load %arg12[%c0_38, %c0_39] : memref<128x128xbf16, #tpu.memory_space<vmem>>, vector<128x128xbf16>
    %cst_40 = arith.constant dense<0.000000e+00> : vector<256x128xf32>
    %64 = tpu.matmul %62, %63, %cst_40 {dimension_numbers = #tpu.dot_dimension_numbers<[1], [0], [0], [1], [0, 0, 1, 1], [], []>} : vector<256x128xbf16>, vector<128x128xbf16>, vector<256x128xf32> -> vector<256x128xf32>
    %c0_41 = arith.constant 0 : index
    %c0_42 = arith.constant 0 : index
    %65 = vector.load %arg13[%c0_41, %c0_42] : memref<1x128xf32, #tpu.memory_space<vmem>>, vector<1x128xf32>
    %66 = vector.broadcast %65 : vector<1x128xf32> to vector<256x128xf32>
    %67 = arith.addf %64, %66 : vector<256x128xf32>
    %68 = vector.extract_strided_slice %67 {offsets = [0, 0], sizes = [256, 1], strides = [1, 1]} : vector<256x128xf32> to vector<256x1xf32>
    %c0_43 = arith.constant 0 : index
    %c0_44 = arith.constant 0 : index
    %69 = vector.load %arg14[%c0_43, %c0_44] : memref<256x1xf32, #tpu.memory_space<vmem>>, vector<256x1xf32>
    tpu.vector_store %arg14[%c0_43, %c0_44], %68 {strides = array<i32>} : memref<256x1xf32, #tpu.memory_space<vmem>>, vector<256x1xf32>,
    return
  }
  func.func @transform_0(%arg0: i32) -> (i32, i32) {
    %c0_i32 = arith.constant 0 : i32
    %c0_i32_0 = arith.constant 0 : i32
    return %arg0, %c0_i32 : i32, i32
  }
  func.func @transform_1(%arg0: i32) -> (i32, i32) {
    %c0_i32 = arith.constant 0 : i32
    %c0_i32_0 = arith.constant 0 : i32
    %c0_i32_1 = arith.constant 0 : i32
    return %c0_i32, %c0_i32_0 : i32, i32
  }
  func.func @transform_2(%arg0: i32) -> (i32, i32) {
    %c0_i32 = arith.constant 0 : i32
    %c0_i32_0 = arith.constant 0 : i32
    %c0_i32_1 = arith.constant 0 : i32
    return %c0_i32, %c0_i32_0 : i32, i32
  }
  func.func @transform_3(%arg0: i32) -> (i32, i32) {
    %c0_i32 = arith.constant 0 : i32
    %c0_i32_0 = arith.constant 0 : i32
    %c0_i32_1 = arith.constant 0 : i32
    return %c0_i32, %c0_i32_0 : i32, i32
  }
  func.func @transform_4(%arg0: i32) -> (i32, i32) {
    %c0_i32 = arith.constant 0 : i32
    %c0_i32_0 = arith.constant 0 : i32
    %c0_i32_1 = arith.constant 0 : i32
    return %c0_i32, %c0_i32_0 : i32, i32
  }
  func.func @transform_5(%arg0: i32) -> (i32, i32) {
    %c0_i32 = arith.constant 0 : i32
    %c0_i32_0 = arith.constant 0 : i32
    %c0_i32_1 = arith.constant 0 : i32
    return %c0_i32, %c0_i32_0 : i32, i32
  }
  func.func @transform_6(%arg0: i32) -> (i32, i32) {
    %c0_i32 = arith.constant 0 : i32
    %c0_i32_0 = arith.constant 0 : i32
    %c0_i32_1 = arith.constant 0 : i32
    return %c0_i32, %c0_i32_0 : i32, i32
  }
  func.func @transform_7(%arg0: i32) -> (i32, i32) {
    %c0_i32 = arith.constant 0 : i32
    %c0_i32_0 = arith.constant 0 : i32
    %c0_i32_1 = arith.constant 0 : i32
    return %c0_i32, %c0_i32_0 : i32, i32
  }
  func.func @transform_8(%arg0: i32) -> (i32, i32) {
    %c0_i32 = arith.constant 0 : i32
    %c0_i32_0 = arith.constant 0 : i32
    %c0_i32_1 = arith.constant 0 : i32
    return %c0_i32, %c0_i32_0 : i32, i32
  }
  func.func @transform_9(%arg0: i32) -> (i32, i32) {
    %c0_i32 = arith.constant 0 : i32
    %c0_i32_0 = arith.constant 0 : i32
    %c0_i32_1 = arith.constant 0 : i32
    return %c0_i32, %c0_i32_0 : i32, i32
  }
  func.func @transform_10(%arg0: i32) -> (i32, i32) {
    %c0_i32 = arith.constant 0 : i32
    %c0_i32_0 = arith.constant 0 : i32
    %c0_i32_1 = arith.constant 0 : i32
    return %c0_i32, %c0_i32_0 : i32, i32
  }
  func.func @transform_11(%arg0: i32) -> (i32, i32) {
    %c0_i32 = arith.constant 0 : i32
    %c0_i32_0 = arith.constant 0 : i32
    %c0_i32_1 = arith.constant 0 : i32
    return %c0_i32, %c0_i32_0 : i32, i32
  }
  func.func @transform_12(%arg0: i32) -> (i32, i32) {
    %c0_i32 = arith.constant 0 : i32
    %c0_i32_0 = arith.constant 0 : i32
    %c0_i32_1 = arith.constant 0 : i32
    return %c0_i32, %c0_i32_0 : i32, i32
  }
  func.func @transform_13(%arg0: i32) -> (i32, i32) {
    %c0_i32 = arith.constant 0 : i32
    %c0_i32_0 = arith.constant 0 : i32
    return %arg0, %c0_i32 : i32, i32
  }
}

</mosaic_0001>

<llo_original>
// kernel: mlp_classifier_forward.1
$region0: #{mlp_classifier_forward.1}
  #allocation0 [shape = 'u32[]', space=smem, size = 0x4, offset = 0x4, fixed_abs, tag = 'smem constant byte address 0x4 - core index']
  #allocation1 [shape = 'u32[72,128]{1,0:T(1,128)}', space=vmem, size = 0x9000, scoped, tag = 'internal scratch']
  %s0 = inlined_call_operand.vmem [shape: bf16[512,64], index: 0, kind: input, shape index: {}]
  %s1 = inlined_call_operand.vmem [shape: bf16[64,256], index: 1, kind: input, shape index: {}]
  %s2 = inlined_call_operand.vmem [shape: f32[1,256], index: 2, kind: input, shape index: {}]
  %s3 = inlined_call_operand.vmem [shape: bf16[256,128], index: 3, kind: input, shape index: {}]
  %s4 = inlined_call_operand.vmem [shape: f32[1,128], index: 4, kind: input, shape index: {}]
  %s5 = inlined_call_operand.vmem [shape: bf16[128,128], index: 5, kind: input, shape index: {}]
  %s6 = inlined_call_operand.vmem [shape: f32[1,128], index: 6, kind: input, shape index: {}]
  %s7 = inlined_call_operand.vmem [shape: bf16[128,128], index: 7, kind: input, shape index: {}]
  %s8 = inlined_call_operand.vmem [shape: f32[1,128], index: 8, kind: input, shape index: {}]
  %s9 = inlined_call_operand.vmem [shape: bf16[128,128], index: 9, kind: input, shape index: {}]
  %s10 = inlined_call_operand.vmem [shape: f32[1,128], index: 10, kind: input, shape index: {}]
  %s11 = inlined_call_operand.vmem [shape: bf16[128,128], index: 11, kind: input, shape index: {}]
  %s12 = inlined_call_operand.vmem [shape: f32[1,128], index: 12, kind: input, shape index: {}]
  %s13 = inlined_call_operand.vmem [shape: f32[512,1], index: 13, kind: output, shape index: {}]
  %s14 = sld [smem:[#allocation0]]
  $region85: #{mlp_classifier_forward.1} parent=0
    _
  %s16 = ssub.s32 1, %s14
  %s17 = scalar_select 0, %s16, %s14
  loop: start=0, step=1, limit=4
  $region2: #{mlp_classifier_forward.1} parent=0 // loop_pre_header
    _
  $region3: #{mlp_classifier_forward.1} parent=0 // loop_header
    %s19 = sphi 0, %s23
    %p20 = scmp.ge.s32.totalorder %s19, 4
    %s29 = sphi 0, %s31
    %s32 = sphi 0, %s29
    %s33 = sphi 0, %s32
    %s49 = sphi 0, %s33
    %s53 = sphi 0, %s53
    %s55 = sphi 0, %s53
    %s56 = sphi 0, %s55
    %s70 = sphi 0, %s56
    %s74 = sphi 0, %s74
    %s76 = sphi 0, %s74
    %s77 = sphi 0, %s76
    %s91 = sphi 0, %s77
    %s95 = sphi 0, %s95
    %s97 = sphi 0, %s95
    %s98 = sphi 0, %s97
    %s112 = sphi 0, %s98
    %s116 = sphi 0, %s116
    %s118 = sphi 0, %s116
    %s119 = sphi 0, %s118
    %s133 = sphi 0, %s119
    %s137 = sphi 0, %s137
    %s139 = sphi 0, %s137
    %s140 = sphi 0, %s139
    %s154 = sphi 0, %s140
    %s158 = sphi 0, %s158
    %s160 = sphi 0, %s158
    %s161 = sphi 0, %s160
    %s175 = sphi 0, %s161
    %s179 = sphi 0, %s179
    %s181 = sphi 0, %s179
    %s182 = sphi 0, %s181
    %s196 = sphi 0, %s182
    %s200 = sphi 0, %s200
    %s202 = sphi 0, %s200
    %s203 = sphi 0, %s202
    %s217 = sphi 0, %s203
    %s221 = sphi 0, %s221
    %s223 = sphi 0, %s221
    %s224 = sphi 0, %s223
    %s238 = sphi 0, %s224
    %s242 = sphi 0, %s242
    %s244 = sphi 0, %s242
    %s245 = sphi 0, %s244
    %s259 = sphi 0, %s245
    %s263 = sphi 0, %s263
    %s265 = sphi 0, %s263
    %s266 = sphi 0, %s265
    %s280 = sphi 0, %s266
    %s284 = sphi 0, %s284
    %s286 = sphi 0, %s284
    %s287 = sphi 0, %s286
    %s301 = sphi 0, %s287
    %s307 = sphi 0, %s309
    %s310 = sphi 0, %s307
    %s311 = sphi 0, %s310
    %s327 = sphi 0, %s311
  $region4: #{mlp_classifier_forward.1} parent=0 // loop_header_branch
    %22 = sbr.rel (%p20) target = $region8
  $region5: #{mlp_classifier_forward.1} parent=0 // loop_body
    %s24 = ssub.s32 %s19, 1
    %s25 = ssub.s32 %s19, 2
    %s26 = sadd.s32 %s19, 1
    %s27 = ssub.s32 %s19, %s26
    %p28 = scmp.eq.s32.totalorder %s27, 0
    %s30 = sadd.s32 %s29, 1
    %s31 = scalar_select %p28, %s29, %s30
    %p34 = pneg %p28
    %p35 = scmp.eq.s32.totalorder %s19, 1
    %p36 = por %p34, %p35
    %p37 = scmp.ne.s32.totalorder %s29, %s32
    %p38 = scmp.eq.s32.totalorder %s19, 0
    %p39 = por %p37, %p38
    %p40 = scmp.ne.s32.totalorder %s29, %s32
    %p41 = scmp.eq.s32.totalorder %s24, 1
    %p42 = por %p40, %p41
    %p43 = scmp.ne.s32.totalorder %s32, %s33
    %p44 = scmp.eq.s32.totalorder %s24, 0
    %p45 = por %p43, %p44
    %p46 = scmp.ne.s32.totalorder %s32, %s33
    %p47 = scmp.eq.s32.totalorder %s25, 1
    %p48 = por %p46, %p47
    %p50 = scmp.ne.s32.totalorder %s33, %s49
    %p51 = scmp.eq.s32.totalorder %s25, 0
    %p52 = por %p50, %p51
    %s54 = sadd.s32 %s53, 1
    %p57 = scmp.eq.s32.totalorder %s19, 1
    %p58 = scmp.ne.s32.totalorder %s53, %s55
    %p59 = scmp.eq.s32.totalorder %s19, 0
    %p60 = por %p58, %p59
    %p61 = scmp.ne.s32.totalorder %s53, %s55
    %p62 = scmp.eq.s32.totalorder %s24, 1
    %p63 = por %p61, %p62
    %p64 = scmp.ne.s32.totalorder %s55, %s56
    %p65 = scmp.eq.s32.totalorder %s24, 0
    %p66 = por %p64, %p65
    %p67 = scmp.ne.s32.totalorder %s55, %s56
    %p68 = scmp.eq.s32.totalorder %s25, 1
    %p69 = por %p67, %p68
    %p71 = scmp.ne.s32.totalorder %s56, %s70
    %p72 = scmp.eq.s32.totalorder %s25, 0
    %p73 = por %p71, %p72
    %s75 = sadd.s32 %s74, 1
    %p78 = scmp.eq.s32.totalorder %s19, 1
    %p79 = scmp.ne.s32.totalorder %s74, %s76
    %p80 = scmp.eq.s32.totalorder %s19, 0
    %p81 = por %p79, %p80
    %p82 = scmp.ne.s32.totalorder %s74, %s76
    %p83 = scmp.eq.s32.totalorder %s24, 1
    %p84 = por %p82, %p83
    %p85 = scmp.ne.s32.totalorder %s76, %s77
    %p86 = scmp.eq.s32.totalorder %s24, 0
    %p87 = por %p85, %p86
    %p88 = scmp.ne.s32.totalorder %s76, %s77
    %p89 = scmp.eq.s32.totalorder %s25, 1
    %p90 = por %p88, %p89
    %p92 = scmp.ne.s32.totalorder %s77, %s91
    %p93 = scmp.eq.s32.totalorder %s25, 0
    %p94 = por %p92, %p93
    %s96 = sadd.s32 %s95, 1
    %p99 = scmp.eq.s32.totalorder %s19, 1
    %p100 = scmp.ne.s32.totalorder %s95, %s97
    %p101 = scmp.eq.s32.totalorder %s19, 0
    %p102 = por %p100, %p101
    %p103 = scmp.ne.s32.totalorder %s95, %s97
    %p104 = scmp.eq.s32.totalorder %s24, 1
    %p105 = por %p103, %p104
    %p106 = scmp.ne.s32.totalorder %s97, %s98
    %p107 = scmp.eq.s32.totalorder %s24, 0
    %p108 = por %p106, %p107
    %p109 = scmp.ne.s32.totalorder %s97, %s98
    %p110 = scmp.eq.s32.totalorder %s25, 1
    %p111 = por %p109, %p110
    %p113 = scmp.ne.s32.totalorder %s98, %s112
    %p114 = scmp.eq.s32.totalorder %s25, 0
    %p115 = por %p113, %p114
    %s117 = sadd.s32 %s116, 1
    %p120 = scmp.eq.s32.totalorder %s19, 1
    %p121 = scmp.ne.s32.totalorder %s116, %s118
    %p122 = scmp.eq.s32.totalorder %s19, 0
    %p123 = por %p121, %p122
    %p124 = scmp.ne.s32.totalorder %s116, %s118
    %p125 = scmp.eq.s32.totalorder %s24, 1
    %p126 = por %p124, %p125
    %p127 = scmp.ne.s32.totalorder %s118, %s119
    %p128 = scmp.eq.s32.totalorder %s24, 0
    %p129 = por %p127, %p128
    %p130 = scmp.ne.s32.totalorder %s118, %s119
    %p131 = scmp.eq.s32.totalorder %s25, 1
    %p132 = por %p130, %p131
    %p134 = scmp.ne.s32.totalorder %s119, %s133
    %p135 = scmp.eq.s32.totalorder %s25, 0
    %p136 = por %p134, %p135
    %s138 = sadd.s32 %s137, 1
    %p141 = scmp.eq.s32.totalorder %s19, 1
    %p142 = scmp.ne.s32.totalorder %s137, %s139
    %p143 = scmp.eq.s32.totalorder %s19, 0
    %p144 = por %p142, %p143
    %p145 = scmp.ne.s32.totalorder %s137, %s139
    %p146 = scmp.eq.s32.totalorder %s24, 1
    %p147 = por %p145, %p146
    %p148 = scmp.ne.s32.totalorder %s139, %s140
    %p149 = scmp.eq.s32.totalorder %s24, 0
    %p150 = por %p148, %p149
    %p151 = scmp.ne.s32.totalorder %s139, %s140
    %p152 = scmp.eq.s32.totalorder %s25, 1
    %p153 = por %p151, %p152
    %p155 = scmp.ne.s32.totalorder %s140, %s154
    %p156 = scmp.eq.s32.totalorder %s25, 0
    %p157 = por %p155, %p156
    %s159 = sadd.s32 %s158, 1
    %p162 = scmp.eq.s32.totalorder %s19, 1
    %p163 = scmp.ne.s32.totalorder %s158, %s160
    %p164 = scmp.eq.s32.totalorder %s19, 0
    %p165 = por %p163, %p164
    %p166 = scmp.ne.s32.totalorder %s158, %s160
    %p167 = scmp.eq.s32.totalorder %s24, 1
    %p168 = por %p166, %p167
    %p169 = scmp.ne.s32.totalorder %s160, %s161
    %p170 = scmp.eq.s32.totalorder %s24, 0
    %p171 = por %p169, %p170
    %p172 = scmp.ne.s32.totalorder %s160, %s161
    %p173 = scmp.eq.s32.totalorder %s25, 1
    %p174 = por %p172, %p173
    %p176 = scmp.ne.s32.totalorder %s161, %s175
    %p177 = scmp.eq.s32.totalorder %s25, 0
    %p178 = por %p176, %p177
    %s180 = sadd.s32 %s179, 1
    %p183 = scmp.eq.s32.totalorder %s19, 1
    %p184 = scmp.ne.s32.totalorder %s179, %s181
    %p185 = scmp.eq.s32.totalorder %s19, 0
    %p186 = por %p184, %p185
    %p187 = scmp.ne.s32.totalorder %s179, %s181
    %p188 = scmp.eq.s32.totalorder %s24, 1
    %p189 = por %p187, %p188
    %p190 = scmp.ne.s32.totalorder %s181, %s182
    %p191 = scmp.eq.s32.totalorder %s24, 0
    %p192 = por %p190, %p191
    %p193 = scmp.ne.s32.totalorder %s181, %s182
    %p194 = scmp.eq.s32.totalorder %s25, 1
    %p195 = por %p193, %p194
    %p197 = scmp.ne.s32.totalorder %s182, %s196
    %p198 = scmp.eq.s32.totalorder %s25, 0
    %p199 = por %p197, %p198
    %s201 = sadd.s32 %s200, 1
    %p204 = scmp.eq.s32.totalorder %s19, 1
    %p205 = scmp.ne.s32.totalorder %s200, %s202
    %p206 = scmp.eq.s32.totalorder %s19, 0
    %p207 = por %p205, %p206
    %p208 = scmp.ne.s32.totalorder %s200, %s202
    %p209 = scmp.eq.s32.totalorder %s24, 1
    %p210 = por %p208, %p209
    %p211 = scmp.ne.s32.totalorder %s202, %s203
    %p212 = scmp.eq.s32.totalorder %s24, 0
    %p213 = por %p211, %p212
    %p214 = scmp.ne.s32.totalorder %s202, %s203
    %p215 = scmp.eq.s32.totalorder %s25, 1
    %p216 = por %p214, %p215
    %p218 = scmp.ne.s32.totalorder %s203, %s217
    %p219 = scmp.eq.s32.totalorder %s25, 0
    %p220 = por %p218, %p219
    %s222 = sadd.s32 %s221, 1
    %p225 = scmp.eq.s32.totalorder %s19, 1
    %p226 = scmp.ne.s32.totalorder %s221, %s223
    %p227 = scmp.eq.s32.totalorder %s19, 0
    %p228 = por %p226, %p227
    %p229 = scmp.ne.s32.totalorder %s221, %s223
    %p230 = scmp.eq.s32.totalorder %s24, 1
    %p231 = por %p229, %p230
    %p232 = scmp.ne.s32.totalorder %s223, %s224
    %p233 = scmp.eq.s32.totalorder %s24, 0
    %p234 = por %p232, %p233
    %p235 = scmp.ne.s32.totalorder %s223, %s224
    %p236 = scmp.eq.s32.totalorder %s25, 1
    %p237 = por %p235, %p236
    %p239 = scmp.ne.s32.totalorder %s224, %s238
    %p240 = scmp.eq.s32.totalorder %s25, 0
    %p241 = por %p239, %p240
    %s243 = sadd.s32 %s242, 1
    %p246 = scmp.eq.s32.totalorder %s19, 1
    %p247 = scmp.ne.s32.totalorder %s242, %s244
    %p248 = scmp.eq.s32.totalorder %s19, 0
    %p249 = por %p247, %p248
    %p250 = scmp.ne.s32.totalorder %s242, %s244
    %p251 = scmp.eq.s32.totalorder %s24, 1
    %p252 = por %p250, %p251
    %p253 = scmp.ne.s32.totalorder %s244, %s245
    %p254 = scmp.eq.s32.totalorder %s24, 0
    %p255 = por %p253, %p254
    %p256 = scmp.ne.s32.totalorder %s244, %s245
    %p257 = scmp.eq.s32.totalorder %s25, 1
    %p258 = por %p256, %p257
    %p260 = scmp.ne.s32.totalorder %s245, %s259
    %p261 = scmp.eq.s32.totalorder %s25, 0
    %p262 = por %p260, %p261
    %s264 = sadd.s32 %s263, 1
    %p267 = scmp.eq.s32.totalorder %s19, 1
    %p268 = scmp.ne.s32.totalorder %s263, %s265
    %p269 = scmp.eq.s32.totalorder %s19, 0
    %p270 = por %p268, %p269
    %p271 = scmp.ne.s32.totalorder %s263, %s265
    %p272 = scmp.eq.s32.totalorder %s24, 1
    %p273 = por %p271, %p272
    %p274 = scmp.ne.s32.totalorder %s265, %s266
    %p275 = scmp.eq.s32.totalorder %s24, 0
    %p276 = por %p274, %p275
    %p277 = scmp.ne.s32.totalorder %s265, %s266
    %p278 = scmp.eq.s32.totalorder %s25, 1
    %p279 = por %p277, %p278
    %p281 = scmp.ne.s32.totalorder %s266, %s280
    %p282 = scmp.eq.s32.totalorder %s25, 0
    %p283 = por %p281, %p282
    %s285 = sadd.s32 %s284, 1
    %p288 = scmp.eq.s32.totalorder %s19, 1
    %p289 = scmp.ne.s32.totalorder %s284, %s286
    %p290 = scmp.eq.s32.totalorder %s19, 0
    %p291 = por %p289, %p290
    %p292 = scmp.ne.s32.totalorder %s284, %s286
    %p293 = scmp.eq.s32.totalorder %s24, 1
    %p294 = por %p292, %p293
    %p295 = scmp.ne.s32.totalorder %s286, %s287
    %p296 = scmp.eq.s32.totalorder %s24, 0
    %p297 = por %p295, %p296
    %p298 = scmp.ne.s32.totalorder %s286, %s287
    %p299 = scmp.eq.s32.totalorder %s25, 1
    %p300 = por %p298, %p299
    %p302 = scmp.ne.s32.totalorder %s287, %s301
    %p303 = scmp.eq.s32.totalorder %s25, 0
    %p304 = por %p302, %p303
    %s305 = ssub.s32 %s19, %s26
    %p306 = scmp.eq.s32.totalorder %s305, 0
    %s308 = sadd.s32 %s307, 1
    %s309 = scalar_select %p306, %s307, %s308
    %p312 = pneg %p306
    %p313 = scmp.eq.s32.totalorder %s19, 1
    %p314 = por %p312, %p313
    %p315 = scmp.ne.s32.totalorder %s307, %s310
    %p316 = scmp.eq.s32.totalorder %s19, 0
    %p317 = por %p315, %p316
    %p318 = scmp.ne.s32.totalorder %s307, %s310
    %p319 = scmp.eq.s32.totalorder %s24, 1
    %p320 = por %p318, %p319
    %p321 = scmp.ne.s32.totalorder %s310, %s311
    %p322 = scmp.eq.s32.totalorder %s24, 0
    %p323 = por %p321, %p322
    %p324 = scmp.ne.s32.totalorder %s310, %s311
    %p325 = scmp.eq.s32.totalorder %s25, 1
    %p326 = por %p324, %p325
    %p328 = scmp.ne.s32.totalorder %s311, %s327
    %p329 = scmp.eq.s32.totalorder %s25, 0
    %p330 = por %p328, %p329
    %p331 = scmp.le.s32.totalorder 1, %s19
    %p332 = scmp.lt.s32.totalorder %s19, 3
    %p333 = pnand %p331, %p332
    %p334 = pneg %p333
    // Predicated region
    $region9: #{mlp_classifier_forward.1} parent=5 // pred_check
      _
    $region10: #{mlp_classifier_forward.1} parent=5 // pred_check_branch
      %336 = sbr.rel (%p333) target = $region12
    $region11: #{mlp_classifier_forward.1} parent=5 // pred_region
      %s337 = ssub.s32 %s19, 1
      // Predicated region
      $region13: #{mlp_classifier_forward.1} parent=11 // pred_check
        %p338 = pneg %p66
      $region14: #{mlp_classifier_forward.1} parent=11 // pred_check_branch
        %340 = sbr.rel (%p338) target = $region16
      $region15: #{mlp_classifier_forward.1} parent=11 // pred_region
        _
      $region16: #{mlp_classifier_forward.1} parent=11 // pred_fallthru
        _
      // Predicated region
      $region17: #{mlp_classifier_forward.1} parent=11 // pred_check
        %p341 = pneg %p87
      $region18: #{mlp_classifier_forward.1} parent=11 // pred_check_branch
        %343 = sbr.rel (%p341) target = $region20
      $region19: #{mlp_classifier_forward.1} parent=11 // pred_region
        _
      $region20: #{mlp_classifier_forward.1} parent=11 // pred_fallthru
        _
      // Predicated region
      $region21: #{mlp_classifier_forward.1} parent=11 // pred_check
        %p344 = pneg %p108
      $region22: #{mlp_classifier_forward.1} parent=11 // pred_check_branch
        %346 = sbr.rel (%p344) target = $region24
      $region23: #{mlp_classifier_forward.1} parent=11 // pred_region
        _
      $region24: #{mlp_classifier_forward.1} parent=11 // pred_fallthru
        _
      // Predicated region
      $region25: #{mlp_classifier_forward.1} parent=11 // pred_check
        %p347 = pneg %p129
      $region26: #{mlp_classifier_forward.1} parent=11 // pred_check_branch
        %349 = sbr.rel (%p347) target = $region28
      $region27: #{mlp_classifier_forward.1} parent=11 // pred_region
        _
      $region28: #{mlp_classifier_forward.1} parent=11 // pred_fallthru
        _
      // Predicated region
      $region29: #{mlp_classifier_forward.1} parent=11 // pred_check
        %p350 = pneg %p150
      $region30: #{mlp_classifier_forward.1} parent=11 // pred_check_branch
        %352 = sbr.rel (%p350) target = $region32
      $region31: #{mlp_classifier_forward.1} parent=11 // pred_region
        _
      $region32: #{mlp_classifier_forward.1} parent=11 // pred_fallthru
        _
      // Predicated region
      $region33: #{mlp_classifier_forward.1} parent=11 // pred_check
        %p353 = pneg %p171
      $region34: #{mlp_classifier_forward.1} parent=11 // pred_check_branch
        %355 = sbr.rel (%p353) target = $region36
      $region35: #{mlp_classifier_forward.1} parent=11 // pred_region
        _
      $region36: #{mlp_classifier_forward.1} parent=11 // pred_fallthru
        _
      // Predicated region
      $region37: #{mlp_classifier_forward.1} parent=11 // pred_check
        %p356 = pneg %p192
      $region38: #{mlp_classifier_forward.1} parent=11 // pred_check_branch
        %358 = sbr.rel (%p356) target = $region40
      $region39: #{mlp_classifier_forward.1} parent=11 // pred_region
        _
      $region40: #{mlp_classifier_forward.1} parent=11 // pred_fallthru
        _
      // Predicated region
      $region41: #{mlp_classifier_forward.1} parent=11 // pred_check
        %p359 = pneg %p213
      $region42: #{mlp_classifier_forward.1} parent=11 // pred_check_branch
        %361 = sbr.rel (%p359) target = $region44
      $region43: #{mlp_classifier_forward.1} parent=11 // pred_region
        _
      $region44: #{mlp_classifier_forward.1} parent=11 // pred_fallthru
        _
      // Predicated region
      $region45: #{mlp_classifier_forward.1} parent=11 // pred_check
        %p362 = pneg %p234
      $region46: #{mlp_classifier_forward.1} parent=11 // pred_check_branch
        %364 = sbr.rel (%p362) target = $region48
      $region47: #{mlp_classifier_forward.1} parent=11 // pred_region
        _
      $region48: #{mlp_classifier_forward.1} parent=11 // pred_fallthru
        _
      // Predicated region
      $region49: #{mlp_classifier_forward.1} parent=11 // pred_check
        %p365 = pneg %p255
      $region50: #{mlp_classifier_forward.1} parent=11 // pred_check_branch
        %367 = sbr.rel (%p365) target = $region52
      $region51: #{mlp_classifier_forward.1} parent=11 // pred_region
        _
      $region52: #{mlp_classifier_forward.1} parent=11 // pred_fallthru
        _
      // Predicated region
      $region53: #{mlp_classifier_forward.1} parent=11 // pred_check
        %p368 = pneg %p276
      $region54: #{mlp_classifier_forward.1} parent=11 // pred_check_branch
        %370 = sbr.rel (%p368) target = $region56
      $region55: #{mlp_classifier_forward.1} parent=11 // pred_region
        _
      $region56: #{mlp_classifier_forward.1} parent=11 // pred_fallthru
        _
      // Predicated region
      $region57: #{mlp_classifier_forward.1} parent=11 // pred_check
        %p371 = pneg %p297
      $region58: #{mlp_classifier_forward.1} parent=11 // pred_check_branch
        %373 = sbr.rel (%p371) target = $region60
      $region59: #{mlp_classifier_forward.1} parent=11 // pred_region
        _
      $region60: #{mlp_classifier_forward.1} parent=11 // pred_fallthru
        _
    $region12: #{mlp_classifier_forward.1} parent=5 // pred_fallthru
      _
    %p374 = scmp.lt.s32.totalorder %s19, 2
    // Predicated region
    $region61: #{mlp_classifier_forward.1} parent=5 // pred_check
      %p375 = pneg %p374
    $region62: #{mlp_classifier_forward.1} parent=5 // pred_check_branch
      %377 = sbr.rel (%p375) target = $region64
    $region63: #{mlp_classifier_forward.1} parent=5 // pred_region
      // Predicated region
      $region65: #{mlp_classifier_forward.1} parent=63 // pred_check
        %p378 = pneg %p39
      $region66: #{mlp_classifier_forward.1} parent=63 // pred_check_branch
        %380 = sbr.rel (%p378) target = $region68
      $region67: #{mlp_classifier_forward.1} parent=63 // pred_region
        %s381 = smul.u32 32, %s19
        %p382 = scmp.lt.s32.totalorder %s381, 63
        %s383 = scalar_select %p382, %s381, 63
        %s384 = smul.addr %s383, 4
        %s385 = scalar_lea.vmem %s0, %s384
        %s386 = smul.u32 32, %s19
      $region68: #{mlp_classifier_forward.1} parent=63 // pred_fallthru
        _
    $region64: #{mlp_classifier_forward.1} parent=5 // pred_fallthru
      _
    %p387 = scmp.le.s32.totalorder 1, %s19
    %p388 = scmp.lt.s32.totalorder %s19, 3
    %p389 = pnand %p387, %p388
    %p390 = pneg %p389
    // Predicated region
    $region69: #{mlp_classifier_forward.1} parent=5 // pred_check
      _
    $region70: #{mlp_classifier_forward.1} parent=5 // pred_check_branch
      %392 = sbr.rel (%p389) target = $region72
    $region71: #{mlp_classifier_forward.1} parent=5 // pred_region
      %s393 = ssub.s32 %s19, 1
      %s394 = smul.u32 32, %s24
      %p395 = scmp.lt.s32.totalorder %s394, 63
      %s396 = scalar_select %p395, %s394, 63
      %s397 = smul.addr %s396, 4
      %s398 = scalar_lea.vmem %s0, %s397
      %p399 = pneg %p45
      %p400 = pneg %p42
      %p401 = pneg %p66
      %p402 = pneg %p63
      %p403 = pneg %p87
      %p404 = pneg %p84
      %p405 = pneg %p108
      %p406 = pneg %p105
      %p407 = pneg %p129
      %p408 = pneg %p126
      %p409 = pneg %p150
      %p410 = pneg %p147
      %p411 = pneg %p171
      %p412 = pneg %p168
      %p413 = pneg %p192
      %p414 = pneg %p189
      %p415 = pneg %p213
      %p416 = pneg %p210
      %p417 = pneg %p234
      %p418 = pneg %p231
      %p419 = pneg %p255
      %p420 = pneg %p252
      %p421 = pneg %p276
      %p422 = pneg %p273
      %p423 = pneg %p297
      %p424 = pneg %p294
      %p425 = pneg %p323
      %p426 = pneg %p320
      %s427 = smul.u32 32, %s24
      %p428 = scmp.lt.s32.totalorder %s427, 63
      %s429 = scalar_select %p428, %s427, 63
      %s430 = smul.addr %s429, 8
      %s431 = scalar_lea.vmem %s13, %s430
      %s432 = smul.u32 32, %s24
      %p433 = scmp.lt.s32.totalorder %s432, 63
      %s434 = scalar_select %p433, %s432, 63
      %s435 = smul.addr %s434, 4
      %s436 = scalar_lea.vmem %s0, %s435
      %s437 = smul.u32 32, %s24
      %s438 = smul.u32 32, %s24
      %p439 = scmp.lt.s32.totalorder %s438, 63
      %s440 = scalar_select %p439, %s438, 63
      %s441 = smul.addr %s440, 8
      %s442 = scalar_lea.vmem %s13, %s441
      %s443 = smul.u32 32, %s24
      %v445 = vld [vmem:[%s436] sm:$0xf]
      %v446 = vld [vmem:[%s436 + $0x4] sm:$0xf]
      %v447 = vld [vmem:[%s436 + $0x8] sm:$0xf]
      %v448 = vld [vmem:[%s436 + $0xc] sm:$0xf]
      %v449 = vld [vmem:[%s436 + $0x10] sm:$0xf]
      %v450 = vld [vmem:[%s436 + $0x14] sm:$0xf]
      %v451 = vld [vmem:[%s436 + $0x18] sm:$0xf]
      %v452 = vld [vmem:[%s436 + $0x1c] sm:$0xf]
      %v453 = vld [vmem:[%s436 + $0x20] sm:$0xf]
      %v454 = vld [vmem:[%s436 + $0x24] sm:$0xf]
      %v455 = vld [vmem:[%s436 + $0x28] sm:$0xf]
      %v456 = vld [vmem:[%s436 + $0x2c] sm:$0xf]
      %v457 = vld [vmem:[%s436 + $0x30] sm:$0xf]
      %v458 = vld [vmem:[%s436 + $0x34] sm:$0xf]
      %v459 = vld [vmem:[%s436 + $0x38] sm:$0xf]
      %v460 = vld [vmem:[%s436 + $0x3c] sm:$0xf]
      %v461 = vld [vmem:[%s436 + $0x40] sm:$0xf]
      %v462 = vld [vmem:[%s436 + $0x44] sm:$0xf]
      %v463 = vld [vmem:[%s436 + $0x48] sm:$0xf]
      %v464 = vld [vmem:[%s436 + $0x4c] sm:$0xf]
      %v465 = vld [vmem:[%s436 + $0x50] sm:$0xf]
      %v466 = vld [vmem:[%s436 + $0x54] sm:$0xf]
      %v467 = vld [vmem:[%s436 + $0x58] sm:$0xf]
      %v468 = vld [vmem:[%s436 + $0x5c] sm:$0xf]
      %v469 = vld [vmem:[%s436 + $0x60] sm:$0xf]
      %v470 = vld [vmem:[%s436 + $0x64] sm:$0xf]
      %v471 = vld [vmem:[%s436 + $0x68] sm:$0xf]
      %v472 = vld [vmem:[%s436 + $0x6c] sm:$0xf]
      %v473 = vld [vmem:[%s436 + $0x70] sm:$0xf]
      %v474 = vld [vmem:[%s436 + $0x74] sm:$0xf]
      %v475 = vld [vmem:[%s436 + $0x78] sm:$0xf]
      %v476 = vld [vmem:[%s436 + $0x7c] sm:$0xf]
      %v477 = vld [vmem:[%s1] sm:$0xff]
      %v478 = vld [vmem:[%s1 + $0x8] sm:$0xff]
      %v479 = vld [vmem:[%s1 + $0x10] sm:$0xff]
      %v480 = vld [vmem:[%s1 + $0x18] sm:$0xff]
      %v481 = vld [vmem:[%s1 + $0x20] sm:$0xff]
      %v482 = vld [vmem:[%s1 + $0x28] sm:$0xff]
      %v483 = vld [vmem:[%s1 + $0x30] sm:$0xff]
      %v484 = vld [vmem:[%s1 + $0x38] sm:$0xff]
      %v485 = vld [vmem:[%s2] sm:$0x3]
      %v487 = vperm.slane %v485, 0
      %v488 = vperm.slane %v485, 1
      %v523 = vunpack.c.l.b16 %v445
      %v524 = vunpack.c.l.b16 %v446
      %v525 = vunpack.c.l.b16 %v447
      %v526 = vunpack.c.l.b16 %v448
      %v527 = vunpack.c.l.b16 %v449
      %v528 = vunpack.c.l.b16 %v450
      %v529 = vunpack.c.l.b16 %v451
      %v530 = vunpack.c.l.b16 %v452
      %v531 = vunpack.c.l.b16 %v453
      %v532 = vunpack.c.l.b16 %v454
      %v533 = vunpack.c.l.b16 %v455
      %v534 = vunpack.c.l.b16 %v456
      %v535 = vunpack.c.l.b16 %v457
      %v536 = vunpack.c.l.b16 %v458
      %v537 = vunpack.c.l.b16 %v459
      %v538 = vunpack.c.l.b16 %v460
      %v539 = vunpack.c.l.b16 %v461
      %v540 = vunpack.c.l.b16 %v462
      %v541 = vunpack.c.l.b16 %v463
      %v542 = vunpack.c.l.b16 %v464
      %v543 = vunpack.c.l.b16 %v465
      %v544 = vunpack.c.l.b16 %v466
      %v545 = vunpack.c.l.b16 %v467
      %v546 = vunpack.c.l.b16 %v468
      %v547 = vunpack.c.l.b16 %v469
      %v548 = vunpack.c.l.b16 %v470
      %v549 = vunpack.c.l.b16 %v471
      %v550 = vunpack.c.l.b16 %v472
      %v551 = vunpack.c.l.b16 %v473
      %v552 = vunpack.c.l.b16 %v474
      %v553 = vunpack.c.l.b16 %v475
      %v554 = vunpack.c.l.b16 %v476
      %v555 = vpack.c.b16 %v524, %v523
      %v556 = vpack.c.b16 %v526, %v525
      %v557 = vpack.c.b16 %v528, %v527
      %v558 = vpack.c.b16 %v530, %v529
      %v559 = vpack.c.b16 %v532, %v531
      %v560 = vpack.c.b16 %v534, %v533
      %v561 = vpack.c.b16 %v536, %v535
      %v562 = vpack.c.b16 %v538, %v537
      %v563 = vpack.c.b16 %v540, %v539
      %v564 = vpack.c.b16 %v542, %v541
      %v565 = vpack.c.b16 %v544, %v543
      %v566 = vpack.c.b16 %v546, %v545
      %v567 = vpack.c.b16 %v548, %v547
      %v568 = vpack.c.b16 %v550, %v549
      %v569 = vpack.c.b16 %v552, %v551
      %v570 = vpack.c.b16 %v554, %v553
      %v579 = vunpack.c.l.b16 %v477
      %v580 = vunpack.c.h.b16 %v477
      %v581 = vunpack.c.l.b16 %v478
      %v582 = vunpack.c.h.b16 %v478
      %v583 = vunpack.c.l.b16 %v479
      %v584 = vunpack.c.h.b16 %v479
      %v585 = vunpack.c.l.b16 %v480
      %v586 = vunpack.c.h.b16 %v480
      %v587 = vunpack.c.l.b16 %v481
      %v588 = vunpack.c.h.b16 %v481
      %v589 = vunpack.c.l.b16 %v482
      %v590 = vunpack.c.h.b16 %v482
      %v591 = vunpack.c.l.b16 %v483
      %v592 = vunpack.c.h.b16 %v483
      %v593 = vunpack.c.l.b16 %v484
      %v594 = vunpack.c.h.b16 %v484
      %v595 = vpack.c.b16 %v581, %v579
      %v596 = vpack.c.b16 %v582, %v580
      %v597 = vpack.c.b16 %v585, %v583
      %v598 = vpack.c.b16 %v586, %v584
      %v599 = vpack.c.b16 %v589, %v587
      %v600 = vpack.c.b16 %v590, %v588
      %v601 = vpack.c.b16 %v593, %v591
      %v602 = vpack.c.b16 %v594, %v592
      %vm611 = vcmask 523264
      %v613 = vsel %vm611, %v555, 0
      %v616 = vsel %vm611, %v556, 0
      %v619 = vsel %vm611, %v557, 0
      %v622 = vsel %vm611, %v558, 0
      %v625 = vsel %vm611, %v559, 0
      %v628 = vsel %vm611, %v560, 0
      %v631 = vsel %vm611, %v561, 0
      %v634 = vsel %vm611, %v562, 0
      %v637 = vsel %vm611, %v563, 0
      %v640 = vsel %vm611, %v564, 0
      %v643 = vsel %vm611, %v565, 0
      %v646 = vsel %vm611, %v566, 0
      %v649 = vsel %vm611, %v567, 0
      %v652 = vsel %vm611, %v568, 0
      %v655 = vsel %vm611, %v569, 0
      %v658 = vsel %vm611, %v570, 0
      %660 = vmatpush.bf16.msra.mxu0 0
      %661 = vmatpush.bf16.msra.mxu0 0
      %662 = vmatpush.bf16.msra.mxu0 0
      %663 = vmatpush.bf16.msra.mxu0 0
      %664 = vmatpush.bf16.msra.mxu0 %v601
      %665 = vmatpush.bf16.msra.mxu0 %v599
      %666 = vmatpush.bf16.msra.mxu0 %v597
      %667 = vmatpush.bf16.msra.mxu0 %v595
      %668 = vmatmul.bf16.gmra.mxu0 %v613
      %v669 = vpop.f32.mrf.mxu0
      %v670 = vadd.f32 %v487, %v669
      %v671 = vpop.f32.mrf.mxu0
      %v672 = vadd.f32 %v487, %v671
      %673 = vmatmul.bf16.gmra.mxu0 %v616
      %v674 = vpop.f32.mrf.mxu0
      %v675 = vadd.f32 %v487, %v674
      %v676 = vpop.f32.mrf.mxu0
      %v677 = vadd.f32 %v487, %v676
      %678 = vmatmul.bf16.gmra.mxu0 %v619
      %v679 = vpop.f32.mrf.mxu0
      %v680 = vadd.f32 %v487, %v679
      %v681 = vpop.f32.mrf.mxu0
      %v682 = vadd.f32 %v487, %v681
      %683 = vmatmul.bf16.gmra.mxu0 %v622
      %v684 = vpop.f32.mrf.mxu0
      %v685 = vadd.f32 %v487, %v684
      %v686 = vpop.f32.mrf.mxu0
      %v687 = vadd.f32 %v487, %v686
      %688 = vmatmul.bf16.gmra.mxu0 %v625
      %v689 = vpop.f32.mrf.mxu0
      %v690 = vadd.f32 %v487, %v689
      %v691 = vpop.f32.mrf.mxu0
      %v692 = vadd.f32 %v487, %v691
      %693 = vmatmul.bf16.gmra.mxu0 %v628
      %v694 = vpop.f32.mrf.mxu0
      %v695 = vadd.f32 %v487, %v694
      %v696 = vpop.f32.mrf.mxu0
      %v697 = vadd.f32 %v487, %v696
      %698 = vmatmul.bf16.gmra.mxu0 %v631
      %v699 = vpop.f32.mrf.mxu0
      %v700 = vadd.f32 %v487, %v699
      %v701 = vpop.f32.mrf.mxu0
      %v702 = vadd.f32 %v487, %v701
      %703 = vmatmul.bf16.gmra.mxu0 %v634
      %v704 = vpop.f32.mrf.mxu0
      %v705 = vadd.f32 %v487, %v704
      %v706 = vpop.f32.mrf.mxu0
      %v707 = vadd.f32 %v487, %v706
      %708 = vmatmul.bf16.gmra.mxu0 %v637
      %v709 = vpop.f32.mrf.mxu0
      %v710 = vadd.f32 %v487, %v709
      %v711 = vpop.f32.mrf.mxu0
      %v712 = vadd.f32 %v487, %v711
      %713 = vmatmul.bf16.gmra.mxu0 %v640
      %v714 = vpop.f32.mrf.mxu0
      %v715 = vadd.f32 %v487, %v714
      %v716 = vpop.f32.mrf.mxu0
      %v717 = vadd.f32 %v487, %v716
      %718 = vmatmul.bf16.gmra.mxu0 %v643
      %v719 = vpop.f32.mrf.mxu0
      %v720 = vadd.f32 %v487, %v719
      %v721 = vpop.f32.mrf.mxu0
      %v722 = vadd.f32 %v487, %v721
      %723 = vmatmul.bf16.gmra.mxu0 %v646
      %v724 = vpop.f32.mrf.mxu0
      %v725 = vadd.f32 %v487, %v724
      %v726 = vpop.f32.mrf.mxu0
      %v727 = vadd.f32 %v487, %v726
      %728 = vmatmul.bf16.gmra.mxu0 %v649
      %v729 = vpop.f32.mrf.mxu0
      %v730 = vadd.f32 %v487, %v729
      %v731 = vpop.f32.mrf.mxu0
      %v732 = vadd.f32 %v487, %v731
      %733 = vmatmul.bf16.gmra.mxu0 %v652
      %v734 = vpop.f32.mrf.mxu0
      %v735 = vadd.f32 %v487, %v734
      %v736 = vpop.f32.mrf.mxu0
      %v737 = vadd.f32 %v487, %v736
      %738 = vmatmul.bf16.gmra.mxu0 %v655
      %v739 = vpop.f32.mrf.mxu0
      %v740 = vadd.f32 %v487, %v739
      %v741 = vpop.f32.mrf.mxu0
      %v742 = vadd.f32 %v487, %v741
      %743 = vmatmul.bf16.gmra.mxu0 %v658
      %v744 = vpop.f32.mrf.mxu0
      %v745 = vadd.f32 %v487, %v744
      %v746 = vpop.f32.mrf.mxu0
      %v747 = vadd.f32 %v487, %v746
      %748 = vdwg.mxu0
      %749 = vmatpush.bf16.msra.mxu0 0
      %750 = vmatpush.bf16.msra.mxu0 0
      %751 = vmatpush.bf16.msra.mxu0 0
      %752 = vmatpush.bf16.msra.mxu0 0
      %753 = vmatpush.bf16.msra.mxu0 %v602
      %754 = vmatpush.bf16.msra.mxu0 %v600
      %755 = vmatpush.bf16.msra.mxu0 %v598
      %756 = vmatpush.bf16.msra.mxu0 %v596
      %757 = vmatmul.bf16.gmra.mxu0 %v613
      %v758 = vpop.f32.mrf.mxu0
      %v759 = vadd.f32 %v488, %v758
      %v760 = vpop.f32.mrf.mxu0
      %v761 = vadd.f32 %v488, %v760
      %762 = vmatmul.bf16.gmra.mxu0 %v616
      %v763 = vpop.f32.mrf.mxu0
      %v764 = vadd.f32 %v488, %v763
      %v765 = vpop.f32.mrf.mxu0
      %v766 = vadd.f32 %v488, %v765
      %767 = vmatmul.bf16.gmra.mxu0 %v619
      %v768 = vpop.f32.mrf.mxu0
      %v769 = vadd.f32 %v488, %v768
      %v770 = vpop.f32.mrf.mxu0
      %v771 = vadd.f32 %v488, %v770
      %772 = vmatmul.bf16.gmra.mxu0 %v622
      %v773 = vpop.f32.mrf.mxu0
      %v774 = vadd.f32 %v488, %v773
      %v775 = vpop.f32.mrf.mxu0
      %v776 = vadd.f32 %v488, %v775
      %777 = vmatmul.bf16.gmra.mxu0 %v625
      %v778 = vpop.f32.mrf.mxu0
      %v779 = vadd.f32 %v488, %v778
      %v780 = vpop.f32.mrf.mxu0
      %v781 = vadd.f32 %v488, %v780
      %782 = vmatmul.bf16.gmra.mxu0 %v628
      %v783 = vpop.f32.mrf.mxu0
      %v784 = vadd.f32 %v488, %v783
      %v785 = vpop.f32.mrf.mxu0
      %v786 = vadd.f32 %v488, %v785
      %787 = vmatmul.bf16.gmra.mxu0 %v631
      %v788 = vpop.f32.mrf.mxu0
      %v789 = vadd.f32 %v488, %v788
      %v790 = vpop.f32.mrf.mxu0
      %v791 = vadd.f32 %v488, %v790
      %792 = vmatmul.bf16.gmra.mxu0 %v634
      %v793 = vpop.f32.mrf.mxu0
      %v794 = vadd.f32 %v488, %v793
      %v795 = vpop.f32.mrf.mxu0
      %v796 = vadd.f32 %v488, %v795
      %797 = vmatmul.bf16.gmra.mxu0 %v637
      %v798 = vpop.f32.mrf.mxu0
      %v799 = vadd.f32 %v488, %v798
      %v800 = vpop.f32.mrf.mxu0
      %v801 = vadd.f32 %v488, %v800
      %802 = vmatmul.bf16.gmra.mxu0 %v640
      %v803 = vpop.f32.mrf.mxu0
      %v804 = vadd.f32 %v488, %v803
      %v805 = vpop.f32.mrf.mxu0
      %v806 = vadd.f32 %v488, %v805
      %807 = vmatmul.bf16.gmra.mxu0 %v643
      %v808 = vpop.f32.mrf.mxu0
      %v809 = vadd.f32 %v488, %v808
      %v810 = vpop.f32.mrf.mxu0
      %v811 = vadd.f32 %v488, %v810
      %812 = vmatmul.bf16.gmra.mxu0 %v646
      %v813 = vpop.f32.mrf.mxu0
      %v814 = vadd.f32 %v488, %v813
      %v815 = vpop.f32.mrf.mxu0
      %v816 = vadd.f32 %v488, %v815
      %817 = vmatmul.bf16.gmra.mxu0 %v649
      %v818 = vpop.f32.mrf.mxu0
      %v819 = vadd.f32 %v488, %v818
      %v820 = vpop.f32.mrf.mxu0
      %v821 = vadd.f32 %v488, %v820
      %822 = vmatmul.bf16.gmra.mxu0 %v652
      %v823 = vpop.f32.mrf.mxu0
      %v824 = vadd.f32 %v488, %v823
      %v825 = vpop.f32.mrf.mxu0
      %v826 = vadd.f32 %v488, %v825
      %827 = vmatmul.bf16.gmra.mxu0 %v655
      %v828 = vpop.f32.mrf.mxu0
      %v829 = vadd.f32 %v488, %v828
      %v830 = vpop.f32.mrf.mxu0
      %v831 = vadd.f32 %v488, %v830
      %832 = vmatmul.bf16.gmra.mxu0 %v658
      %v833 = vpop.f32.mrf.mxu0
      %v834 = vadd.f32 %v488, %v833
      %v835 = vpop.f32.mrf.mxu0
      %v836 = vadd.f32 %v488, %v835
      %837 = vdwg.mxu0
      %vm838 = vcmp.gt.f32.partialorder %v670, 0.0
      %vm839 = vcmp.gt.f32.partialorder %v759, 0.0
      %vm840 = vcmp.gt.f32.partialorder %v672, 0.0
      %vm841 = vcmp.gt.f32.partialorder %v761, 0.0
      %vm842 = vcmp.gt.f32.partialorder %v675, 0.0
      %vm843 = vcmp.gt.f32.partialorder %v764, 0.0
      %vm844 = vcmp.gt.f32.partialorder %v677, 0.0
      %vm845 = vcmp.gt.f32.partialorder %v766, 0.0
      %vm846 = vcmp.gt.f32.partialorder %v680, 0.0
      %vm847 = vcmp.gt.f32.partialorder %v769, 0.0
      %vm848 = vcmp.gt.f32.partialorder %v682, 0.0
      %vm849 = vcmp.gt.f32.partialorder %v771, 0.0
      %vm850 = vcmp.gt.f32.partialorder %v685, 0.0
      %vm851 = vcmp.gt.f32.partialorder %v774, 0.0
      %vm852 = vcmp.gt.f32.partialorder %v687, 0.0
      %vm853 = vcmp.gt.f32.partialorder %v776, 0.0
      %vm854 = vcmp.gt.f32.partialorder %v690, 0.0
      %vm855 = vcmp.gt.f32.partialorder %v779, 0.0
      %vm856 = vcmp.gt.f32.partialorder %v692, 0.0
      %vm857 = vcmp.gt.f32.partialorder %v781, 0.0
      %vm858 = vcmp.gt.f32.partialorder %v695, 0.0
      %vm859 = vcmp.gt.f32.partialorder %v784, 0.0
      %vm860 = vcmp.gt.f32.partialorder %v697, 0.0
      %vm861 = vcmp.gt.f32.partialorder %v786, 0.0
      %vm862 = vcmp.gt.f32.partialorder %v700, 0.0
      %vm863 = vcmp.gt.f32.partialorder %v789, 0.0
      %vm864 = vcmp.gt.f32.partialorder %v702, 0.0
      %vm865 = vcmp.gt.f32.partialorder %v791, 0.0
      %vm866 = vcmp.gt.f32.partialorder %v705, 0.0
      %vm867 = vcmp.gt.f32.partialorder %v794, 0.0
      %vm868 = vcmp.gt.f32.partialorder %v707, 0.0
      %vm869 = vcmp.gt.f32.partialorder %v796, 0.0
      %vm870 = vcmp.gt.f32.partialorder %v710, 0.0
      %vm871 = vcmp.gt.f32.partialorder %v799, 0.0
      %vm872 = vcmp.gt.f32.partialorder %v712, 0.0
      %vm873 = vcmp.gt.f32.partialorder %v801, 0.0
      %vm874 = vcmp.gt.f32.partialorder %v715, 0.0
      %vm875 = vcmp.gt.f32.partialorder %v804, 0.0
      %vm876 = vcmp.gt.f32.partialorder %v717, 0.0
      %vm877 = vcmp.gt.f32.partialorder %v806, 0.0
      %vm878 = vcmp.gt.f32.partialorder %v720, 0.0
      %vm879 = vcmp.gt.f32.partialorder %v809, 0.0
      %vm880 = vcmp.gt.f32.partialorder %v722, 0.0
      %vm881 = vcmp.gt.f32.partialorder %v811, 0.0
      %vm882 = vcmp.gt.f32.partialorder %v725, 0.0
      %vm883 = vcmp.gt.f32.partialorder %v814, 0.0
      %vm884 = vcmp.gt.f32.partialorder %v727, 0.0
      %vm885 = vcmp.gt.f32.partialorder %v816, 0.0
      %vm886 = vcmp.gt.f32.partialorder %v730, 0.0
      %vm887 = vcmp.gt.f32.partialorder %v819, 0.0
      %vm888 = vcmp.gt.f32.partialorder %v732, 0.0
      %vm889 = vcmp.gt.f32.partialorder %v821, 0.0
      %vm890 = vcmp.gt.f32.partialorder %v735, 0.0
      %vm891 = vcmp.gt.f32.partialorder %v824, 0.0
      %vm892 = vcmp.gt.f32.partialorder %v737, 0.0
      %vm893 = vcmp.gt.f32.partialorder %v826, 0.0
      %vm894 = vcmp.gt.f32.partialorder %v740, 0.0
      %vm895 = vcmp.gt.f32.partialorder %v829, 0.0
      %vm896 = vcmp.gt.f32.partialorder %v742, 0.0
      %vm897 = vcmp.gt.f32.partialorder %v831, 0.0
      %vm898 = vcmp.gt.f32.partialorder %v745, 0.0
      %vm899 = vcmp.gt.f32.partialorder %v834, 0.0
      %vm900 = vcmp.gt.f32.partialorder %v747, 0.0
      %vm901 = vcmp.gt.f32.partialorder %v836, 0.0
      %v902 = vmul.f32 %v670, 0.2
      %v903 = vmul.f32 %v759, 0.2
      %v904 = vmul.f32 %v672, 0.2
      %v905 = vmul.f32 %v761, 0.2
      %v906 = vmul.f32 %v675, 0.2
      %v907 = vmul.f32 %v764, 0.2
      %v908 = vmul.f32 %v677, 0.2
      %v909 = vmul.f32 %v766, 0.2
      %v910 = vmul.f32 %v680, 0.2
      %v911 = vmul.f32 %v769, 0.2
      %v912 = vmul.f32 %v682, 0.2
      %v913 = vmul.f32 %v771, 0.2
      %v914 = vmul.f32 %v685, 0.2
      %v915 = vmul.f32 %v774, 0.2
      %v916 = vmul.f32 %v687, 0.2
      %v917 = vmul.f32 %v776, 0.2
      %v918 = vmul.f32 %v690, 0.2
      %v919 = vmul.f32 %v779, 0.2
      %v920 = vmul.f32 %v692, 0.2
      %v921 = vmul.f32 %v781, 0.2
      %v922 = vmul.f32 %v695, 0.2
      %v923 = vmul.f32 %v784, 0.2
      %v924 = vmul.f32 %v697, 0.2
      %v925 = vmul.f32 %v786, 0.2
      %v926 = vmul.f32 %v700, 0.2
      %v927 = vmul.f32 %v789, 0.2
      %v928 = vmul.f32 %v702, 0.2
      %v929 = vmul.f32 %v791, 0.2
      %v930 = vmul.f32 %v705, 0.2
      %v931 = vmul.f32 %v794, 0.2
      %v932 = vmul.f32 %v707, 0.2
      %v933 = vmul.f32 %v796, 0.2
      %v934 = vmul.f32 %v710, 0.2
      %v935 = vmul.f32 %v799, 0.2
      %v936 = vmul.f32 %v712, 0.2
      %v937 = vmul.f32 %v801, 0.2
      %v938 = vmul.f32 %v715, 0.2
      %v939 = vmul.f32 %v804, 0.2
      %v940 = vmul.f32 %v717, 0.2
      %v941 = vmul.f32 %v806, 0.2
      %v942 = vmul.f32 %v720, 0.2
      %v943 = vmul.f32 %v809, 0.2
      %v944 = vmul.f32 %v722, 0.2
      %v945 = vmul.f32 %v811, 0.2
      %v946 = vmul.f32 %v725, 0.2
      %v947 = vmul.f32 %v814, 0.2
      %v948 = vmul.f32 %v727, 0.2
      %v949 = vmul.f32 %v816, 0.2
      %v950 = vmul.f32 %v730, 0.2
      %v951 = vmul.f32 %v819, 0.2
      %v952 = vmul.f32 %v732, 0.2
      %v953 = vmul.f32 %v821, 0.2
      %v954 = vmul.f32 %v735, 0.2
      %v955 = vmul.f32 %v824, 0.2
      %v956 = vmul.f32 %v737, 0.2
      %v957 = vmul.f32 %v826, 0.2
      %v958 = vmul.f32 %v740, 0.2
      %v959 = vmul.f32 %v829, 0.2
      %v960 = vmul.f32 %v742, 0.2
      %v961 = vmul.f32 %v831, 0.2
      %v962 = vmul.f32 %v745, 0.2
      %v963 = vmul.f32 %v834, 0.2
      %v964 = vmul.f32 %v747, 0.2
      %v965 = vmul.f32 %v836, 0.2
      %v966 = vsel %vm838, %v670, %v902
      %v967 = vsel %vm839, %v759, %v903
      %v968 = vsel %vm840, %v672, %v904
      %v969 = vsel %vm841, %v761, %v905
      %v970 = vsel %vm842, %v675, %v906
      %v971 = vsel %vm843, %v764, %v907
      %v972 = vsel %vm844, %v677, %v908
      %v973 = vsel %vm845, %v766, %v909
      %v974 = vsel %vm846, %v680, %v910
      %v975 = vsel %vm847, %v769, %v911
      %v976 = vsel %vm848, %v682, %v912
      %v977 = vsel %vm849, %v771, %v913
      %v978 = vsel %vm850, %v685, %v914
      %v979 = vsel %vm851, %v774, %v915
      %v980 = vsel %vm852, %v687, %v916
      %v981 = vsel %vm853, %v776, %v917
      %v982 = vsel %vm854, %v690, %v918
      %v983 = vsel %vm855, %v779, %v919
      %v984 = vsel %vm856, %v692, %v920
      %v985 = vsel %vm857, %v781, %v921
      %v986 = vsel %vm858, %v695, %v922
      %v987 = vsel %vm859, %v784, %v923
      %v988 = vsel %vm860, %v697, %v924
      %v989 = vsel %vm861, %v786, %v925
      %v990 = vsel %vm862, %v700, %v926
      %v991 = vsel %vm863, %v789, %v927
      %v992 = vsel %vm864, %v702, %v928
      %v993 = vsel %vm865, %v791, %v929
      %v994 = vsel %vm866, %v705, %v930
      %v995 = vsel %vm867, %v794, %v931
      %v996 = vsel %vm868, %v707, %v932
      %v997 = vsel %vm869, %v796, %v933
      %v998 = vsel %vm870, %v710, %v934
      %v999 = vsel %vm871, %v799, %v935
      %v1000 = vsel %vm872, %v712, %v936
      %v1001 = vsel %vm873, %v801, %v937
      %v1002 = vsel %vm874, %v715, %v938
      %v1003 = vsel %vm875, %v804, %v939
      %v1004 = vsel %vm876, %v717, %v940
      %v1005 = vsel %vm877, %v806, %v941
      %v1006 = vsel %vm878, %v720, %v942
      %v1007 = vsel %vm879, %v809, %v943
      %v1008 = vsel %vm880, %v722, %v944
      %v1009 = vsel %vm881, %v811, %v945
      %v1010 = vsel %vm882, %v725, %v946
      %v1011 = vsel %vm883, %v814, %v947
      %v1012 = vsel %vm884, %v727, %v948
      %v1013 = vsel %vm885, %v816, %v949
      %v1014 = vsel %vm886, %v730, %v950
      %v1015 = vsel %vm887, %v819, %v951
      %v1016 = vsel %vm888, %v732, %v952
      %v1017 = vsel %vm889, %v821, %v953
      %v1018 = vsel %vm890, %v735, %v954
      %v1019 = vsel %vm891, %v824, %v955
      %v1020 = vsel %vm892, %v737, %v956
      %v1021 = vsel %vm893, %v826, %v957
      %v1022 = vsel %vm894, %v740, %v958
      %v1023 = vsel %vm895, %v829, %v959
      %v1024 = vsel %vm896, %v742, %v960
      %v1025 = vsel %vm897, %v831, %v961
      %v1026 = vsel %vm898, %v745, %v962
      %v1027 = vsel %vm899, %v834, %v963
      %v1028 = vsel %vm900, %v747, %v964
      %v1029 = vsel %vm901, %v836, %v965
      %v1030 = vpack.c.bf16 %v968, %v966
      %v1031 = vpack.c.bf16 %v969, %v967
      %v1032 = vpack.c.bf16 %v972, %v970
      %v1033 = vpack.c.bf16 %v973, %v971
      %v1034 = vpack.c.bf16 %v976, %v974
      %v1035 = vpack.c.bf16 %v977, %v975
      %v1036 = vpack.c.bf16 %v980, %v978
      %v1037 = vpack.c.bf16 %v981, %v979
      %v1038 = vpack.c.bf16 %v984, %v982
      %v1039 = vpack.c.bf16 %v985, %v983
      %v1040 = vpack.c.bf16 %v988, %v986
      %v1041 = vpack.c.bf16 %v989, %v987
      %v1042 = vpack.c.bf16 %v992, %v990
      %v1043 = vpack.c.bf16 %v993, %v991
      %v1044 = vpack.c.bf16 %v996, %v994
      %v1045 = vpack.c.bf16 %v997, %v995
      %v1046 = vpack.c.bf16 %v1000, %v998
      %v1047 = vpack.c.bf16 %v1001, %v999
      %v1048 = vpack.c.bf16 %v1004, %v1002
      %v1049 = vpack.c.bf16 %v1005, %v1003
      %v1050 = vpack.c.bf16 %v1008, %v1006
      %v1051 = vpack.c.bf16 %v1009, %v1007
      %v1052 = vpack.c.bf16 %v1012, %v1010
      %v1053 = vpack.c.bf16 %v1013, %v1011
      %v1054 = vpack.c.bf16 %v1016, %v1014
      %v1055 = vpack.c.bf16 %v1017, %v1015
      %v1056 = vpack.c.bf16 %v1020, %v1018
      %v1057 = vpack.c.bf16 %v1021, %v1019
      %v1058 = vpack.c.bf16 %v1024, %v1022
      %v1059 = vpack.c.bf16 %v1025, %v1023
      %v1060 = vpack.c.bf16 %v1028, %v1026
      %v1061 = vpack.c.bf16 %v1029, %v1027
      %v1062 = vld [vmem:[%s3] sm:$0xf]
      %v1063 = vld [vmem:[%s3 + $0x4] sm:$0xf]
      %v1064 = vld [vmem:[%s3 + $0x8] sm:$0xf]
      %v1065 = vld [vmem:[%s3 + $0xc] sm:$0xf]
      %v1066 = vld [vmem:[%s3 + $0x10] sm:$0xf]
      %v1067 = vld [vmem:[%s3 + $0x14] sm:$0xf]
      %v1068 = vld [vmem:[%s3 + $0x18] sm:$0xf]
      %v1069 = vld [vmem:[%s3 + $0x1c] sm:$0xf]
      %v1070 = vld [vmem:[%s3 + $0x20] sm:$0xf]
      %v1071 = vld [vmem:[%s3 + $0x24] sm:$0xf]
      %v1072 = vld [vmem:[%s3 + $0x28] sm:$0xf]
      %v1073 = vld [vmem:[%s3 + $0x2c] sm:$0xf]
      %v1074 = vld [vmem:[%s3 + $0x30] sm:$0xf]
      %v1075 = vld [vmem:[%s3 + $0x34] sm:$0xf]
      %v1076 = vld [vmem:[%s3 + $0x38] sm:$0xf]
      %v1077 = vld [vmem:[%s3 + $0x3c] sm:$0xf]
      %v1078 = vld [vmem:[%s3 + $0x40] sm:$0xf]
      %v1079 = vld [vmem:[%s3 + $0x44] sm:$0xf]
      %v1080 = vld [vmem:[%s3 + $0x48] sm:$0xf]
      %v1081 = vld [vmem:[%s3 + $0x4c] sm:$0xf]
      %v1082 = vld [vmem:[%s3 + $0x50] sm:$0xf]
      %v1083 = vld [vmem:[%s3 + $0x54] sm:$0xf]
      %v1084 = vld [vmem:[%s3 + $0x58] sm:$0xf]
      %v1085 = vld [vmem:[%s3 + $0x5c] sm:$0xf]
      %v1086 = vld [vmem:[%s3 + $0x60] sm:$0xf]
      %v1087 = vld [vmem:[%s3 + $0x64] sm:$0xf]
      %v1088 = vld [vmem:[%s3 + $0x68] sm:$0xf]
      %v1089 = vld [vmem:[%s3 + $0x6c] sm:$0xf]
      %v1090 = vld [vmem:[%s3 + $0x70] sm:$0xf]
      %v1091 = vld [vmem:[%s3 + $0x74] sm:$0xf]
      %v1092 = vld [vmem:[%s3 + $0x78] sm:$0xf]
      %v1093 = vld [vmem:[%s3 + $0x7c] sm:$0xf]
      %v1094 = vld [vmem:[%s4] sm:$0x1]
      %v1096 = vperm.slane %v1094, 0
      %v1130 = vunpack.c.l.b16 %v1062
      %v1131 = vunpack.c.l.b16 %v1063
      %v1132 = vunpack.c.l.b16 %v1064
      %v1133 = vunpack.c.l.b16 %v1065
      %v1134 = vunpack.c.l.b16 %v1066
      %v1135 = vunpack.c.l.b16 %v1067
      %v1136 = vunpack.c.l.b16 %v1068
      %v1137 = vunpack.c.l.b16 %v1069
      %v1138 = vunpack.c.l.b16 %v1070
      %v1139 = vunpack.c.l.b16 %v1071
      %v1140 = vunpack.c.l.b16 %v1072
      %v1141 = vunpack.c.l.b16 %v1073
      %v1142 = vunpack.c.l.b16 %v1074
      %v1143 = vunpack.c.l.b16 %v1075
      %v1144 = vunpack.c.l.b16 %v1076
      %v1145 = vunpack.c.l.b16 %v1077
      %v1146 = vunpack.c.l.b16 %v1078
      %v1147 = vunpack.c.l.b16 %v1079
      %v1148 = vunpack.c.l.b16 %v1080
      %v1149 = vunpack.c.l.b16 %v1081
      %v1150 = vunpack.c.l.b16 %v1082
      %v1151 = vunpack.c.l.b16 %v1083
      %v1152 = vunpack.c.l.b16 %v1084
      %v1153 = vunpack.c.l.b16 %v1085
      %v1154 = vunpack.c.l.b16 %v1086
      %v1155 = vunpack.c.l.b16 %v1087
      %v1156 = vunpack.c.l.b16 %v1088
      %v1157 = vunpack.c.l.b16 %v1089
      %v1158 = vunpack.c.l.b16 %v1090
      %v1159 = vunpack.c.l.b16 %v1091
      %v1160 = vunpack.c.l.b16 %v1092
      %v1161 = vunpack.c.l.b16 %v1093
      %v1162 = vpack.c.b16 %v1131, %v1130
      %v1163 = vpack.c.b16 %v1133, %v1132
      %v1164 = vpack.c.b16 %v1135, %v1134
      %v1165 = vpack.c.b16 %v1137, %v1136
      %v1166 = vpack.c.b16 %v1139, %v1138
      %v1167 = vpack.c.b16 %v1141, %v1140
      %v1168 = vpack.c.b16 %v1143, %v1142
      %v1169 = vpack.c.b16 %v1145, %v1144
      %v1170 = vpack.c.b16 %v1147, %v1146
      %v1171 = vpack.c.b16 %v1149, %v1148
      %v1172 = vpack.c.b16 %v1151, %v1150
      %v1173 = vpack.c.b16 %v1153, %v1152
      %v1174 = vpack.c.b16 %v1155, %v1154
      %v1175 = vpack.c.b16 %v1157, %v1156
      %v1176 = vpack.c.b16 %v1159, %v1158
      %v1177 = vpack.c.b16 %v1161, %v1160
      %1194 = vmatpush.bf16.msra.mxu0 %v1169
      %1195 = vmatpush.bf16.msra.mxu0 %v1168
      %1196 = vmatpush.bf16.msra.mxu0 %v1167
      %1197 = vmatpush.bf16.msra.mxu0 %v1166
      %1198 = vmatpush.bf16.msra.mxu0 %v1165
      %1199 = vmatpush.bf16.msra.mxu0 %v1164
      %1200 = vmatpush.bf16.msra.mxu0 %v1163
      %1201 = vmatpush.bf16.msra.mxu0 %v1162
      %1202 = vmatmul.bf16.gmra.mxu0 %v1030
      %v1203 = vpop.f32.mrf.mxu0
      %v1204 = vadd.f32 %v1096, %v1203
      %v1205 = vpop.f32.mrf.mxu0
      %v1206 = vadd.f32 %v1096, %v1205
      %1207 = vmatmul.bf16.gmra.mxu0 %v1032
      %v1208 = vpop.f32.mrf.mxu0
      %v1209 = vadd.f32 %v1096, %v1208
      %v1210 = vpop.f32.mrf.mxu0
      %v1211 = vadd.f32 %v1096, %v1210
      %1212 = vmatmul.bf16.gmra.mxu0 %v1034
      %v1213 = vpop.f32.mrf.mxu0
      %v1214 = vadd.f32 %v1096, %v1213
      %v1215 = vpop.f32.mrf.mxu0
      %v1216 = vadd.f32 %v1096, %v1215
      %1217 = vmatmul.bf16.gmra.mxu0 %v1036
      %v1218 = vpop.f32.mrf.mxu0
      %v1219 = vadd.f32 %v1096, %v1218
      %v1220 = vpop.f32.mrf.mxu0
      %v1221 = vadd.f32 %v1096, %v1220
      %1222 = vmatmul.bf16.gmra.mxu0 %v1038
      %v1223 = vpop.f32.mrf.mxu0
      %v1224 = vadd.f32 %v1096, %v1223
      %v1225 = vpop.f32.mrf.mxu0
      %v1226 = vadd.f32 %v1096, %v1225
      %1227 = vmatmul.bf16.gmra.mxu0 %v1040
      %v1228 = vpop.f32.mrf.mxu0
      %v1229 = vadd.f32 %v1096, %v1228
      %v1230 = vpop.f32.mrf.mxu0
      %v1231 = vadd.f32 %v1096, %v1230
      %1232 = vmatmul.bf16.gmra.mxu0 %v1042
      %v1233 = vpop.f32.mrf.mxu0
      %v1234 = vadd.f32 %v1096, %v1233
      %v1235 = vpop.f32.mrf.mxu0
      %v1236 = vadd.f32 %v1096, %v1235
      %1237 = vmatmul.bf16.gmra.mxu0 %v1044
      %v1238 = vpop.f32.mrf.mxu0
      %v1239 = vadd.f32 %v1096, %v1238
      %v1240 = vpop.f32.mrf.mxu0
      %v1241 = vadd.f32 %v1096, %v1240
      %1242 = vmatmul.bf16.gmra.mxu0 %v1046
      %v1243 = vpop.f32.mrf.mxu0
      %v1244 = vadd.f32 %v1096, %v1243
      %v1245 = vpop.f32.mrf.mxu0
      %v1246 = vadd.f32 %v1096, %v1245
      %1247 = vmatmul.bf16.gmra.mxu0 %v1048
      %v1248 = vpop.f32.mrf.mxu0
      %v1249 = vadd.f32 %v1096, %v1248
      %v1250 = vpop.f32.mrf.mxu0
      %v1251 = vadd.f32 %v1096, %v1250
      %1252 = vmatmul.bf16.gmra.mxu0 %v1050
      %v1253 = vpop.f32.mrf.mxu0
      %v1254 = vadd.f32 %v1096, %v1253
      %v1255 = vpop.f32.mrf.mxu0
      %v1256 = vadd.f32 %v1096, %v1255
      %1257 = vmatmul.bf16.gmra.mxu0 %v1052
      %v1258 = vpop.f32.mrf.mxu0
      %v1259 = vadd.f32 %v1096, %v1258
      %v1260 = vpop.f32.mrf.mxu0
      %v1261 = vadd.f32 %v1096, %v1260
      %1262 = vmatmul.bf16.gmra.mxu0 %v1054
      %v1263 = vpop.f32.mrf.mxu0
      %v1264 = vadd.f32 %v1096, %v1263
      %v1265 = vpop.f32.mrf.mxu0
      %v1266 = vadd.f32 %v1096, %v1265
      %1267 = vmatmul.bf16.gmra.mxu0 %v1056
      %v1268 = vpop.f32.mrf.mxu0
      %v1269 = vadd.f32 %v1096, %v1268
      %v1270 = vpop.f32.mrf.mxu0
      %v1271 = vadd.f32 %v1096, %v1270
      %1272 = vmatmul.bf16.gmra.mxu0 %v1058
      %v1273 = vpop.f32.mrf.mxu0
      %v1274 = vadd.f32 %v1096, %v1273
      %v1275 = vpop.f32.mrf.mxu0
      %v1276 = vadd.f32 %v1096, %v1275
      %1277 = vmatmul.bf16.gmra.mxu0 %v1060
      %v1278 = vpop.f32.mrf.mxu0
      %v1279 = vadd.f32 %v1096, %v1278
      %v1280 = vpop.f32.mrf.mxu0
      %v1281 = vadd.f32 %v1096, %v1280
      %1282 = vdwg.mxu0
      %1283 = vmatpush.bf16.msra.mxu0 %v1177
      %1284 = vmatpush.bf16.msra.mxu0 %v1176
      %1285 = vmatpush.bf16.msra.mxu0 %v1175
      %1286 = vmatpush.bf16.msra.mxu0 %v1174
      %1287 = vmatpush.bf16.msra.mxu0 %v1173
      %1288 = vmatpush.bf16.msra.mxu0 %v1172
      %1289 = vmatpush.bf16.msra.mxu0 %v1171
      %1290 = vmatpush.bf16.msra.mxu0 %v1170
      %1291 = vmatmul.bf16.gmra.mxu0 %v1031
      %v1292 = vpop.f32.mrf.mxu0
      %v1293 = vadd.f32 %v1204, %v1292
      %v1294 = vpop.f32.mrf.mxu0
      %v1295 = vadd.f32 %v1206, %v1294
      %1296 = vmatmul.bf16.gmra.mxu0 %v1033
      %v1297 = vpop.f32.mrf.mxu0
      %v1298 = vadd.f32 %v1209, %v1297
      %v1299 = vpop.f32.mrf.mxu0
      %v1300 = vadd.f32 %v1211, %v1299
      %1301 = vmatmul.bf16.gmra.mxu0 %v1035
      %v1302 = vpop.f32.mrf.mxu0
      %v1303 = vadd.f32 %v1214, %v1302
      %v1304 = vpop.f32.mrf.mxu0
      %v1305 = vadd.f32 %v1216, %v1304
      %1306 = vmatmul.bf16.gmra.mxu0 %v1037
      %v1307 = vpop.f32.mrf.mxu0
      %v1308 = vadd.f32 %v1219, %v1307
      %v1309 = vpop.f32.mrf.mxu0
      %v1310 = vadd.f32 %v1221, %v1309
      %1311 = vmatmul.bf16.gmra.mxu0 %v1039
      %v1312 = vpop.f32.mrf.mxu0
      %v1313 = vadd.f32 %v1224, %v1312
      %v1314 = vpop.f32.mrf.mxu0
      %v1315 = vadd.f32 %v1226, %v1314
      %1316 = vmatmul.bf16.gmra.mxu0 %v1041
      %v1317 = vpop.f32.mrf.mxu0
      %v1318 = vadd.f32 %v1229, %v1317
      %v1319 = vpop.f32.mrf.mxu0
      %v1320 = vadd.f32 %v1231, %v1319
      %1321 = vmatmul.bf16.gmra.mxu0 %v1043
      %v1322 = vpop.f32.mrf.mxu0
      %v1323 = vadd.f32 %v1234, %v1322
      %v1324 = vpop.f32.mrf.mxu0
      %v1325 = vadd.f32 %v1236, %v1324
      %1326 = vmatmul.bf16.gmra.mxu0 %v1045
      %v1327 = vpop.f32.mrf.mxu0
      %v1328 = vadd.f32 %v1239, %v1327
      %v1329 = vpop.f32.mrf.mxu0
      %v1330 = vadd.f32 %v1241, %v1329
      %1331 = vmatmul.bf16.gmra.mxu0 %v1047
      %v1332 = vpop.f32.mrf.mxu0
      %v1333 = vadd.f32 %v1244, %v1332
      %v1334 = vpop.f32.mrf.mxu0
      %v1335 = vadd.f32 %v1246, %v1334
      %1336 = vmatmul.bf16.gmra.mxu0 %v1049
      %v1337 = vpop.f32.mrf.mxu0
      %v1338 = vadd.f32 %v1249, %v1337
      %v1339 = vpop.f32.mrf.mxu0
      %v1340 = vadd.f32 %v1251, %v1339
      %1341 = vmatmul.bf16.gmra.mxu0 %v1051
      %v1342 = vpop.f32.mrf.mxu0
      %v1343 = vadd.f32 %v1254, %v1342
      %v1344 = vpop.f32.mrf.mxu0
      %v1345 = vadd.f32 %v1256, %v1344
      %1346 = vmatmul.bf16.gmra.mxu0 %v1053
      %v1347 = vpop.f32.mrf.mxu0
      %v1348 = vadd.f32 %v1259, %v1347
      %v1349 = vpop.f32.mrf.mxu0
      %v1350 = vadd.f32 %v1261, %v1349
      %1351 = vmatmul.bf16.gmra.mxu0 %v1055
      %v1352 = vpop.f32.mrf.mxu0
      %v1353 = vadd.f32 %v1264, %v1352
      %v1354 = vpop.f32.mrf.mxu0
      %v1355 = vadd.f32 %v1266, %v1354
      %1356 = vmatmul.bf16.gmra.mxu0 %v1057
      %v1357 = vpop.f32.mrf.mxu0
      %v1358 = vadd.f32 %v1269, %v1357
      %v1359 = vpop.f32.mrf.mxu0
      %v1360 = vadd.f32 %v1271, %v1359
      %1361 = vmatmul.bf16.gmra.mxu0 %v1059
      %v1362 = vpop.f32.mrf.mxu0
      %v1363 = vadd.f32 %v1274, %v1362
      %v1364 = vpop.f32.mrf.mxu0
      %v1365 = vadd.f32 %v1276, %v1364
      %1366 = vmatmul.bf16.gmra.mxu0 %v1061
      %v1367 = vpop.f32.mrf.mxu0
      %v1368 = vadd.f32 %v1279, %v1367
      %v1369 = vpop.f32.mrf.mxu0
      %v1370 = vadd.f32 %v1281, %v1369
      %1371 = vdwg.mxu0
      %vm1372 = vcmp.gt.f32.partialorder %v1293, 0.0
      %vm1373 = vcmp.gt.f32.partialorder %v1295, 0.0
      %vm1374 = vcmp.gt.f32.partialorder %v1298, 0.0
      %vm1375 = vcmp.gt.f32.partialorder %v1300, 0.0
      %vm1376 = vcmp.gt.f32.partialorder %v1303, 0.0
      %vm1377 = vcmp.gt.f32.partialorder %v1305, 0.0
      %vm1378 = vcmp.gt.f32.partialorder %v1308, 0.0
      %vm1379 = vcmp.gt.f32.partialorder %v1310, 0.0
      %vm1380 = vcmp.gt.f32.partialorder %v1313, 0.0
      %vm1381 = vcmp.gt.f32.partialorder %v1315, 0.0
      %vm1382 = vcmp.gt.f32.partialorder %v1318, 0.0
      %vm1383 = vcmp.gt.f32.partialorder %v1320, 0.0
      %vm1384 = vcmp.gt.f32.partialorder %v1323, 0.0
      %vm1385 = vcmp.gt.f32.partialorder %v1325, 0.0
      %vm1386 = vcmp.gt.f32.partialorder %v1328, 0.0
      %vm1387 = vcmp.gt.f32.partialorder %v1330, 0.0
      %vm1388 = vcmp.gt.f32.partialorder %v1333, 0.0
      %vm1389 = vcmp.gt.f32.partialorder %v1335, 0.0
      %vm1390 = vcmp.gt.f32.partialorder %v1338, 0.0
      %vm1391 = vcmp.gt.f32.partialorder %v1340, 0.0
      %vm1392 = vcmp.gt.f32.partialorder %v1343, 0.0
      %vm1393 = vcmp.gt.f32.partialorder %v1345, 0.0
      %vm1394 = vcmp.gt.f32.partialorder %v1348, 0.0
      %vm1395 = vcmp.gt.f32.partialorder %v1350, 0.0
      %vm1396 = vcmp.gt.f32.partialorder %v1353, 0.0
      %vm1397 = vcmp.gt.f32.partialorder %v1355, 0.0
      %vm1398 = vcmp.gt.f32.partialorder %v1358, 0.0
      %vm1399 = vcmp.gt.f32.partialorder %v1360, 0.0
      %vm1400 = vcmp.gt.f32.partialorder %v1363, 0.0
      %vm1401 = vcmp.gt.f32.partialorder %v1365, 0.0
      %vm1402 = vcmp.gt.f32.partialorder %v1368, 0.0
      %vm1403 = vcmp.gt.f32.partialorder %v1370, 0.0
      %v1404 = vmul.f32 %v1293, 0.2
      %v1405 = vmul.f32 %v1295, 0.2
      %v1406 = vmul.f32 %v1298, 0.2
      %v1407 = vmul.f32 %v1300, 0.2
      %v1408 = vmul.f32 %v1303, 0.2
      %v1409 = vmul.f32 %v1305, 0.2
      %v1410 = vmul.f32 %v1308, 0.2
      %v1411 = vmul.f32 %v1310, 0.2
      %v1412 = vmul.f32 %v1313, 0.2
      %v1413 = vmul.f32 %v1315, 0.2
      %v1414 = vmul.f32 %v1318, 0.2
      %v1415 = vmul.f32 %v1320, 0.2
      %v1416 = vmul.f32 %v1323, 0.2
      %v1417 = vmul.f32 %v1325, 0.2
      %v1418 = vmul.f32 %v1328, 0.2
      %v1419 = vmul.f32 %v1330, 0.2
      %v1420 = vmul.f32 %v1333, 0.2
      %v1421 = vmul.f32 %v1335, 0.2
      %v1422 = vmul.f32 %v1338, 0.2
      %v1423 = vmul.f32 %v1340, 0.2
      %v1424 = vmul.f32 %v1343, 0.2
      %v1425 = vmul.f32 %v1345, 0.2
      %v1426 = vmul.f32 %v1348, 0.2
      %v1427 = vmul.f32 %v1350, 0.2
      %v1428 = vmul.f32 %v1353, 0.2
      %v1429 = vmul.f32 %v1355, 0.2
      %v1430 = vmul.f32 %v1358, 0.2
      %v1431 = vmul.f32 %v1360, 0.2
      %v1432 = vmul.f32 %v1363, 0.2
      %v1433 = vmul.f32 %v1365, 0.2
      %v1434 = vmul.f32 %v1368, 0.2
      %v1435 = vmul.f32 %v1370, 0.2
      %v1436 = vsel %vm1372, %v1293, %v1404
      %v1437 = vsel %vm1373, %v1295, %v1405
      %v1438 = vsel %vm1374, %v1298, %v1406
      %v1439 = vsel %vm1375, %v1300, %v1407
      %v1440 = vsel %vm1376, %v1303, %v1408
      %v1441 = vsel %vm1377, %v1305, %v1409
      %v1442 = vsel %vm1378, %v1308, %v1410
      %v1443 = vsel %vm1379, %v1310, %v1411
      %v1444 = vsel %vm1380, %v1313, %v1412
      %v1445 = vsel %vm1381, %v1315, %v1413
      %v1446 = vsel %vm1382, %v1318, %v1414
      %v1447 = vsel %vm1383, %v1320, %v1415
      %v1448 = vsel %vm1384, %v1323, %v1416
      %v1449 = vsel %vm1385, %v1325, %v1417
      %v1450 = vsel %vm1386, %v1328, %v1418
      %v1451 = vsel %vm1387, %v1330, %v1419
      %v1452 = vsel %vm1388, %v1333, %v1420
      %v1453 = vsel %vm1389, %v1335, %v1421
      %v1454 = vsel %vm1390, %v1338, %v1422
      %v1455 = vsel %vm1391, %v1340, %v1423
      %v1456 = vsel %vm1392, %v1343, %v1424
      %v1457 = vsel %vm1393, %v1345, %v1425
      %v1458 = vsel %vm1394, %v1348, %v1426
      %v1459 = vsel %vm1395, %v1350, %v1427
      %v1460 = vsel %vm1396, %v1353, %v1428
      %v1461 = vsel %vm1397, %v1355, %v1429
      %v1462 = vsel %vm1398, %v1358, %v1430
      %v1463 = vsel %vm1399, %v1360, %v1431
      %v1464 = vsel %vm1400, %v1363, %v1432
      %v1465 = vsel %vm1401, %v1365, %v1433
      %v1466 = vsel %vm1402, %v1368, %v1434
      %v1467 = vsel %vm1403, %v1370, %v1435
      %v1468 = vpack.c.bf16 %v1436, %v1436
      %v1469 = vpack.c.bf16 %v1437, %v1437
      %v1470 = vpack.c.bf16 %v1438, %v1438
      %v1471 = vpack.c.bf16 %v1439, %v1439
      %v1472 = vpack.c.bf16 %v1440, %v1440
      %v1473 = vpack.c.bf16 %v1441, %v1441
      %v1474 = vpack.c.bf16 %v1442, %v1442
      %v1475 = vpack.c.bf16 %v1443, %v1443
      %v1476 = vpack.c.bf16 %v1444, %v1444
      %v1477 = vpack.c.bf16 %v1445, %v1445
      %v1478 = vpack.c.bf16 %v1446, %v1446
      %v1479 = vpack.c.bf16 %v1447, %v1447
      %v1480 = vpack.c.bf16 %v1448, %v1448
      %v1481 = vpack.c.bf16 %v1449, %v1449
      %v1482 = vpack.c.bf16 %v1450, %v1450
      %v1483 = vpack.c.bf16 %v1451, %v1451
      %v1484 = vpack.c.bf16 %v1452, %v1452
      %v1485 = vpack.c.bf16 %v1453, %v1453
      %v1486 = vpack.c.bf16 %v1454, %v1454
      %v1487 = vpack.c.bf16 %v1455, %v1455
      %v1488 = vpack.c.bf16 %v1456, %v1456
      %v1489 = vpack.c.bf16 %v1457, %v1457
      %v1490 = vpack.c.bf16 %v1458, %v1458
      %v1491 = vpack.c.bf16 %v1459, %v1459
      %v1492 = vpack.c.bf16 %v1460, %v1460
      %v1493 = vpack.c.bf16 %v1461, %v1461
      %v1494 = vpack.c.bf16 %v1462, %v1462
      %v1495 = vpack.c.bf16 %v1463, %v1463
      %v1496 = vpack.c.bf16 %v1464, %v1464
      %v1497 = vpack.c.bf16 %v1465, %v1465
      %v1498 = vpack.c.bf16 %v1466, %v1466
      %v1499 = vpack.c.bf16 %v1467, %v1467
      %v1500 = vld [vmem:[%s5] sm:$0xf]
      %v1501 = vld [vmem:[%s5 + $0x4] sm:$0xf]
      %v1502 = vld [vmem:[%s5 + $0x8] sm:$0xf]
      %v1503 = vld [vmem:[%s5 + $0xc] sm:$0xf]
      %v1504 = vld [vmem:[%s5 + $0x10] sm:$0xf]
      %v1505 = vld [vmem:[%s5 + $0x14] sm:$0xf]
      %v1506 = vld [vmem:[%s5 + $0x18] sm:$0xf]
      %v1507 = vld [vmem:[%s5 + $0x1c] sm:$0xf]
      %v1508 = vld [vmem:[%s5 + $0x20] sm:$0xf]
      %v1509 = vld [vmem:[%s5 + $0x24] sm:$0xf]
      %v1510 = vld [vmem:[%s5 + $0x28] sm:$0xf]
      %v1511 = vld [vmem:[%s5 + $0x2c] sm:$0xf]
      %v1512 = vld [vmem:[%s5 + $0x30] sm:$0xf]
      %v1513 = vld [vmem:[%s5 + $0x34] sm:$0xf]
      %v1514 = vld [vmem:[%s5 + $0x38] sm:$0xf]
      %v1515 = vld [vmem:[%s5 + $0x3c] sm:$0xf]
      %v1516 = vld [vmem:[%s6] sm:$0x1]
      %v1518 = vperm.slane %v1516, 0
      %v1552 = vunpack.c.l.b16 %v1468
      %v1553 = vunpack.c.l.b16 %v1469
      %v1554 = vunpack.c.l.b16 %v1470
      %v1555 = vunpack.c.l.b16 %v1471
      %v1556 = vunpack.c.l.b16 %v1472
      %v1557 = vunpack.c.l.b16 %v1473
      %v1558 = vunpack.c.l.b16 %v1474
      %v1559 = vunpack.c.l.b16 %v1475
      %v1560 = vunpack.c.l.b16 %v1476
      %v1561 = vunpack.c.l.b16 %v1477
      %v1562 = vunpack.c.l.b16 %v1478
      %v1563 = vunpack.c.l.b16 %v1479
      %v1564 = vunpack.c.l.b16 %v1480
      %v1565 = vunpack.c.l.b16 %v1481
      %v1566 = vunpack.c.l.b16 %v1482
      %v1567 = vunpack.c.l.b16 %v1483
      %v1568 = vunpack.c.l.b16 %v1484
      %v1569 = vunpack.c.l.b16 %v1485
      %v1570 = vunpack.c.l.b16 %v1486
      %v1571 = vunpack.c.l.b16 %v1487
      %v1572 = vunpack.c.l.b16 %v1488
      %v1573 = vunpack.c.l.b16 %v1489
      %v1574 = vunpack.c.l.b16 %v1490
      %v1575 = vunpack.c.l.b16 %v1491
      %v1576 = vunpack.c.l.b16 %v1492
      %v1577 = vunpack.c.l.b16 %v1493
      %v1578 = vunpack.c.l.b16 %v1494
      %v1579 = vunpack.c.l.b16 %v1495
      %v1580 = vunpack.c.l.b16 %v1496
      %v1581 = vunpack.c.l.b16 %v1497
      %v1582 = vunpack.c.l.b16 %v1498
      %v1583 = vunpack.c.l.b16 %v1499
      %v1584 = vpack.c.b16 %v1553, %v1552
      %v1585 = vpack.c.b16 %v1555, %v1554
      %v1586 = vpack.c.b16 %v1557, %v1556
      %v1587 = vpack.c.b16 %v1559, %v1558
      %v1588 = vpack.c.b16 %v1561, %v1560
      %v1589 = vpack.c.b16 %v1563, %v1562
      %v1590 = vpack.c.b16 %v1565, %v1564
      %v1591 = vpack.c.b16 %v1567, %v1566
      %v1592 = vpack.c.b16 %v1569, %v1568
      %v1593 = vpack.c.b16 %v1571, %v1570
      %v1594 = vpack.c.b16 %v1573, %v1572
      %v1595 = vpack.c.b16 %v1575, %v1574
      %v1596 = vpack.c.b16 %v1577, %v1576
      %v1597 = vpack.c.b16 %v1579, %v1578
      %v1598 = vpack.c.b16 %v1581, %v1580
      %v1599 = vpack.c.b16 %v1583, %v1582
      %v1632 = vunpack.c.l.b16 %v1500
      %v1633 = vunpack.c.l.b16 %v1501
      %v1634 = vunpack.c.l.b16 %v1502
      %v1635 = vunpack.c.l.b16 %v1503
      %v1636 = vunpack.c.l.b16 %v1504
      %v1637 = vunpack.c.l.b16 %v1505
      %v1638 = vunpack.c.l.b16 %v1506
      %v1639 = vunpack.c.l.b16 %v1507
      %v1640 = vunpack.c.l.b16 %v1508
      %v1641 = vunpack.c.l.b16 %v1509
      %v1642 = vunpack.c.l.b16 %v1510
      %v1643 = vunpack.c.l.b16 %v1511
      %v1644 = vunpack.c.l.b16 %v1512
      %v1645 = vunpack.c.l.b16 %v1513
      %v1646 = vunpack.c.l.b16 %v1514
      %v1647 = vunpack.c.l.b16 %v1515
      %v1648 = vpack.c.b16 %v1633, %v1632
      %v1649 = vpack.c.b16 %v1635, %v1634
      %v1650 = vpack.c.b16 %v1637, %v1636
      %v1651 = vpack.c.b16 %v1639, %v1638
      %v1652 = vpack.c.b16 %v1641, %v1640
      %v1653 = vpack.c.b16 %v1643, %v1642
      %v1654 = vpack.c.b16 %v1645, %v1644
      %v1655 = vpack.c.b16 %v1647, %v1646
      %1664 = vmatpush.bf16.msra.mxu0 %v1655
      %1665 = vmatpush.bf16.msra.mxu0 %v1654
      %1666 = vmatpush.bf16.msra.mxu0 %v1653
      %1667 = vmatpush.bf16.msra.mxu0 %v1652
      %1668 = vmatpush.bf16.msra.mxu0 %v1651
      %1669 = vmatpush.bf16.msra.mxu0 %v1650
      %1670 = vmatpush.bf16.msra.mxu0 %v1649
      %1671 = vmatpush.bf16.msra.mxu0 %v1648
      %1672 = vmatmul.bf16.gmra.mxu0 %v1584
      %v1673 = vpop.f32.mrf.mxu0
      %v1674 = vadd.f32 %v1518, %v1673
      %v1675 = vpop.f32.mrf.mxu0
      %v1676 = vadd.f32 %v1518, %v1675
      %1677 = vmatmul.bf16.gmra.mxu0 %v1585
      %v1678 = vpop.f32.mrf.mxu0
      %v1679 = vadd.f32 %v1518, %v1678
      %v1680 = vpop.f32.mrf.mxu0
      %v1681 = vadd.f32 %v1518, %v1680
      %1682 = vmatmul.bf16.gmra.mxu0 %v1586
      %v1683 = vpop.f32.mrf.mxu0
      %v1684 = vadd.f32 %v1518, %v1683
      %v1685 = vpop.f32.mrf.mxu0
      %v1686 = vadd.f32 %v1518, %v1685
      %1687 = vmatmul.bf16.gmra.mxu0 %v1587
      %v1688 = vpop.f32.mrf.mxu0
      %v1689 = vadd.f32 %v1518, %v1688
      %v1690 = vpop.f32.mrf.mxu0
      %v1691 = vadd.f32 %v1518, %v1690
      %1692 = vmatmul.bf16.gmra.mxu0 %v1588
      %v1693 = vpop.f32.mrf.mxu0
      %v1694 = vadd.f32 %v1518, %v1693
      %v1695 = vpop.f32.mrf.mxu0
      %v1696 = vadd.f32 %v1518, %v1695
      %1697 = vmatmul.bf16.gmra.mxu0 %v1589
      %v1698 = vpop.f32.mrf.mxu0
      %v1699 = vadd.f32 %v1518, %v1698
      %v1700 = vpop.f32.mrf.mxu0
      %v1701 = vadd.f32 %v1518, %v1700
      %1702 = vmatmul.bf16.gmra.mxu0 %v1590
      %v1703 = vpop.f32.mrf.mxu0
      %v1704 = vadd.f32 %v1518, %v1703
      %v1705 = vpop.f32.mrf.mxu0
      %v1706 = vadd.f32 %v1518, %v1705
      %1707 = vmatmul.bf16.gmra.mxu0 %v1591
      %v1708 = vpop.f32.mrf.mxu0
      %v1709 = vadd.f32 %v1518, %v1708
      %v1710 = vpop.f32.mrf.mxu0
      %v1711 = vadd.f32 %v1518, %v1710
      %1712 = vmatmul.bf16.gmra.mxu0 %v1592
      %v1713 = vpop.f32.mrf.mxu0
      %v1714 = vadd.f32 %v1518, %v1713
      %v1715 = vpop.f32.mrf.mxu0
      %v1716 = vadd.f32 %v1518, %v1715
      %1717 = vmatmul.bf16.gmra.mxu0 %v1593
      %v1718 = vpop.f32.mrf.mxu0
      %v1719 = vadd.f32 %v1518, %v1718
      %v1720 = vpop.f32.mrf.mxu0
      %v1721 = vadd.f32 %v1518, %v1720
      %1722 = vmatmul.bf16.gmra.mxu0 %v1594
      %v1723 = vpop.f32.mrf.mxu0
      %v1724 = vadd.f32 %v1518, %v1723
      %v1725 = vpop.f32.mrf.mxu0
      %v1726 = vadd.f32 %v1518, %v1725
      %1727 = vmatmul.bf16.gmra.mxu0 %v1595
      %v1728 = vpop.f32.mrf.mxu0
      %v1729 = vadd.f32 %v1518, %v1728
      %v1730 = vpop.f32.mrf.mxu0
      %v1731 = vadd.f32 %v1518, %v1730
      %1732 = vmatmul.bf16.gmra.mxu0 %v1596
      %v1733 = vpop.f32.mrf.mxu0
      %v1734 = vadd.f32 %v1518, %v1733
      %v1735 = vpop.f32.mrf.mxu0
      %v1736 = vadd.f32 %v1518, %v1735
      %1737 = vmatmul.bf16.gmra.mxu0 %v1597
      %v1738 = vpop.f32.mrf.mxu0
      %v1739 = vadd.f32 %v1518, %v1738
      %v1740 = vpop.f32.mrf.mxu0
      %v1741 = vadd.f32 %v1518, %v1740
      %1742 = vmatmul.bf16.gmra.mxu0 %v1598
      %v1743 = vpop.f32.mrf.mxu0
      %v1744 = vadd.f32 %v1518, %v1743
      %v1745 = vpop.f32.mrf.mxu0
      %v1746 = vadd.f32 %v1518, %v1745
      %1747 = vmatmul.bf16.gmra.mxu0 %v1599
      %v1748 = vpop.f32.mrf.mxu0
      %v1749 = vadd.f32 %v1518, %v1748
      %v1750 = vpop.f32.mrf.mxu0
      %v1751 = vadd.f32 %v1518, %v1750
      %1752 = vdwg.mxu0
      %v1753 = vmax.f32 %v1674, 0.0
      %v1754 = vmax.f32 %v1676, 0.0
      %v1755 = vmax.f32 %v1679, 0.0
      %v1756 = vmax.f32 %v1681, 0.0
      %v1757 = vmax.f32 %v1684, 0.0
      %v1758 = vmax.f32 %v1686, 0.0
      %v1759 = vmax.f32 %v1689, 0.0
      %v1760 = vmax.f32 %v1691, 0.0
      %v1761 = vmax.f32 %v1694, 0.0
      %v1762 = vmax.f32 %v1696, 0.0
      %v1763 = vmax.f32 %v1699, 0.0
      %v1764 = vmax.f32 %v1701, 0.0
      %v1765 = vmax.f32 %v1704, 0.0
      %v1766 = vmax.f32 %v1706, 0.0
      %v1767 = vmax.f32 %v1709, 0.0
      %v1768 = vmax.f32 %v1711, 0.0
      %v1769 = vmax.f32 %v1714, 0.0
      %v1770 = vmax.f32 %v1716, 0.0
      %v1771 = vmax.f32 %v1719, 0.0
      %v1772 = vmax.f32 %v1721, 0.0
      %v1773 = vmax.f32 %v1724, 0.0
      %v1774 = vmax.f32 %v1726, 0.0
      %v1775 = vmax.f32 %v1729, 0.0
      %v1776 = vmax.f32 %v1731, 0.0
      %v1777 = vmax.f32 %v1734, 0.0
      %v1778 = vmax.f32 %v1736, 0.0
      %v1779 = vmax.f32 %v1739, 0.0
      %v1780 = vmax.f32 %v1741, 0.0
      %v1781 = vmax.f32 %v1744, 0.0
      %v1782 = vmax.f32 %v1746, 0.0
      %v1783 = vmax.f32 %v1749, 0.0
      %v1784 = vmax.f32 %v1751, 0.0
      %v1785 = vpack.c.bf16 %v1754, %v1753
      %v1786 = vpack.c.bf16 %v1756, %v1755
      %v1787 = vpack.c.bf16 %v1758, %v1757
      %v1788 = vpack.c.bf16 %v1760, %v1759
      %v1789 = vpack.c.bf16 %v1762, %v1761
      %v1790 = vpack.c.bf16 %v1764, %v1763
      %v1791 = vpack.c.bf16 %v1766, %v1765
      %v1792 = vpack.c.bf16 %v1768, %v1767
      %v1793 = vpack.c.bf16 %v1770, %v1769
      %v1794 = vpack.c.bf16 %v1772, %v1771
      %v1795 = vpack.c.bf16 %v1774, %v1773
      %v1796 = vpack.c.bf16 %v1776, %v1775
      %v1797 = vpack.c.bf16 %v1778, %v1777
      %v1798 = vpack.c.bf16 %v1780, %v1779
      %v1799 = vpack.c.bf16 %v1782, %v1781
      %v1800 = vpack.c.bf16 %v1784, %v1783
      %v1801 = vld [vmem:[%s7] sm:$0xf]
      %v1802 = vld [vmem:[%s7 + $0x4] sm:$0xf]
      %v1803 = vld [vmem:[%s7 + $0x8] sm:$0xf]
      %v1804 = vld [vmem:[%s7 + $0xc] sm:$0xf]
      %v1805 = vld [vmem:[%s7 + $0x10] sm:$0xf]
      %v1806 = vld [vmem:[%s7 + $0x14] sm:$0xf]
      %v1807 = vld [vmem:[%s7 + $0x18] sm:$0xf]
      %v1808 = vld [vmem:[%s7 + $0x1c] sm:$0xf]
      %v1809 = vld [vmem:[%s7 + $0x20] sm:$0xf]
      %v1810 = vld [vmem:[%s7 + $0x24] sm:$0xf]
      %v1811 = vld [vmem:[%s7 + $0x28] sm:$0xf]
      %v1812 = vld [vmem:[%s7 + $0x2c] sm:$0xf]
      %v1813 = vld [vmem:[%s7 + $0x30] sm:$0xf]
      %v1814 = vld [vmem:[%s7 + $0x34] sm:$0xf]
      %v1815 = vld [vmem:[%s7 + $0x38] sm:$0xf]
      %v1816 = vld [vmem:[%s7 + $0x3c] sm:$0xf]
      %v1817 = vld [vmem:[%s8] sm:$0x1]
      %v1819 = vperm.slane %v1817, 0
      %v1837 = vunpack.c.l.b16 %v1801
      %v1838 = vunpack.c.l.b16 %v1802
      %v1839 = vunpack.c.l.b16 %v1803
      %v1840 = vunpack.c.l.b16 %v1804
      %v1841 = vunpack.c.l.b16 %v1805
      %v1842 = vunpack.c.l.b16 %v1806
      %v1843 = vunpack.c.l.b16 %v1807
      %v1844 = vunpack.c.l.b16 %v1808
      %v1845 = vunpack.c.l.b16 %v1809
      %v1846 = vunpack.c.l.b16 %v1810
      %v1847 = vunpack.c.l.b16 %v1811
      %v1848 = vunpack.c.l.b16 %v1812
      %v1849 = vunpack.c.l.b16 %v1813
      %v1850 = vunpack.c.l.b16 %v1814
      %v1851 = vunpack.c.l.b16 %v1815
      %v1852 = vunpack.c.l.b16 %v1816
      %v1853 = vpack.c.b16 %v1838, %v1837
      %v1854 = vpack.c.b16 %v1840, %v1839
      %v1855 = vpack.c.b16 %v1842, %v1841
      %v1856 = vpack.c.b16 %v1844, %v1843
      %v1857 = vpack.c.b16 %v1846, %v1845
      %v1858 = vpack.c.b16 %v1848, %v1847
      %v1859 = vpack.c.b16 %v1850, %v1849
      %v1860 = vpack.c.b16 %v1852, %v1851
      %1869 = vmatpush.bf16.msra.mxu0 %v1860
      %1870 = vmatpush.bf16.msra.mxu0 %v1859
      %1871 = vmatpush.bf16.msra.mxu0 %v1858
      %1872 = vmatpush.bf16.msra.mxu0 %v1857
      %1873 = vmatpush.bf16.msra.mxu0 %v1856
      %1874 = vmatpush.bf16.msra.mxu0 %v1855
      %1875 = vmatpush.bf16.msra.mxu0 %v1854
      %1876 = vmatpush.bf16.msra.mxu0 %v1853
      %1877 = vmatmul.bf16.gmra.mxu0 %v1785
      %v1878 = vpop.f32.mrf.mxu0
      %v1879 = vadd.f32 %v1819, %v1878
      %v1880 = vpop.f32.mrf.mxu0
      %v1881 = vadd.f32 %v1819, %v1880
      %1882 = vmatmul.bf16.gmra.mxu0 %v1786
      %v1883 = vpop.f32.mrf.mxu0
      %v1884 = vadd.f32 %v1819, %v1883
      %v1885 = vpop.f32.mrf.mxu0
      %v1886 = vadd.f32 %v1819, %v1885
      %1887 = vmatmul.bf16.gmra.mxu0 %v1787
      %v1888 = vpop.f32.mrf.mxu0
      %v1889 = vadd.f32 %v1819, %v1888
      %v1890 = vpop.f32.mrf.mxu0
      %v1891 = vadd.f32 %v1819, %v1890
      %1892 = vmatmul.bf16.gmra.mxu0 %v1788
      %v1893 = vpop.f32.mrf.mxu0
      %v1894 = vadd.f32 %v1819, %v1893
      %v1895 = vpop.f32.mrf.mxu0
      %v1896 = vadd.f32 %v1819, %v1895
      %1897 = vmatmul.bf16.gmra.mxu0 %v1789
      %v1898 = vpop.f32.mrf.mxu0
      %v1899 = vadd.f32 %v1819, %v1898
      %v1900 = vpop.f32.mrf.mxu0
      %v1901 = vadd.f32 %v1819, %v1900
      %1902 = vmatmul.bf16.gmra.mxu0 %v1790
      %v1903 = vpop.f32.mrf.mxu0
      %v1904 = vadd.f32 %v1819, %v1903
      %v1905 = vpop.f32.mrf.mxu0
      %v1906 = vadd.f32 %v1819, %v1905
      %1907 = vmatmul.bf16.gmra.mxu0 %v1791
      %v1908 = vpop.f32.mrf.mxu0
      %v1909 = vadd.f32 %v1819, %v1908
      %v1910 = vpop.f32.mrf.mxu0
      %v1911 = vadd.f32 %v1819, %v1910
      %1912 = vmatmul.bf16.gmra.mxu0 %v1792
      %v1913 = vpop.f32.mrf.mxu0
      %v1914 = vadd.f32 %v1819, %v1913
      %v1915 = vpop.f32.mrf.mxu0
      %v1916 = vadd.f32 %v1819, %v1915
      %1917 = vmatmul.bf16.gmra.mxu0 %v1793
      %v1918 = vpop.f32.mrf.mxu0
      %v1919 = vadd.f32 %v1819, %v1918
      %v1920 = vpop.f32.mrf.mxu0
      %v1921 = vadd.f32 %v1819, %v1920
      %1922 = vmatmul.bf16.gmra.mxu0 %v1794
      %v1923 = vpop.f32.mrf.mxu0
      %v1924 = vadd.f32 %v1819, %v1923
      %v1925 = vpop.f32.mrf.mxu0
      %v1926 = vadd.f32 %v1819, %v1925
      %1927 = vmatmul.bf16.gmra.mxu0 %v1795
      %v1928 = vpop.f32.mrf.mxu0
      %v1929 = vadd.f32 %v1819, %v1928
      %v1930 = vpop.f32.mrf.mxu0
      %v1931 = vadd.f32 %v1819, %v1930
      %1932 = vmatmul.bf16.gmra.mxu0 %v1796
      %v1933 = vpop.f32.mrf.mxu0
      %v1934 = vadd.f32 %v1819, %v1933
      %v1935 = vpop.f32.mrf.mxu0
      %v1936 = vadd.f32 %v1819, %v1935
      %1937 = vmatmul.bf16.gmra.mxu0 %v1797
      %v1938 = vpop.f32.mrf.mxu0
      %v1939 = vadd.f32 %v1819, %v1938
      %v1940 = vpop.f32.mrf.mxu0
      %v1941 = vadd.f32 %v1819, %v1940
      %1942 = vmatmul.bf16.gmra.mxu0 %v1798
      %v1943 = vpop.f32.mrf.mxu0
      %v1944 = vadd.f32 %v1819, %v1943
      %v1945 = vpop.f32.mrf.mxu0
      %v1946 = vadd.f32 %v1819, %v1945
      %1947 = vmatmul.bf16.gmra.mxu0 %v1799
      %v1948 = vpop.f32.mrf.mxu0
      %v1949 = vadd.f32 %v1819, %v1948
      %v1950 = vpop.f32.mrf.mxu0
      %v1951 = vadd.f32 %v1819, %v1950
      %1952 = vmatmul.bf16.gmra.mxu0 %v1800
      %v1953 = vpop.f32.mrf.mxu0
      %v1954 = vadd.f32 %v1819, %v1953
      %v1955 = vpop.f32.mrf.mxu0
      %v1956 = vadd.f32 %v1819, %v1955
      %1957 = vdwg.mxu0
      %v1958 = vmul.f32 %v1879, 0.5
      %v1959 = vmul.f32 %v1881, 0.5
      %v1960 = vmul.f32 %v1884, 0.5
      %v1961 = vmul.f32 %v1886, 0.5
      %v1962 = vmul.f32 %v1889, 0.5
      %v1963 = vmul.f32 %v1891, 0.5
      %v1964 = vmul.f32 %v1894, 0.5
      %v1965 = vmul.f32 %v1896, 0.5
      %v1966 = vmul.f32 %v1899, 0.5
      %v1967 = vmul.f32 %v1901, 0.5
      %v1968 = vmul.f32 %v1904, 0.5
      %v1969 = vmul.f32 %v1906, 0.5
      %v1970 = vmul.f32 %v1909, 0.5
      %v1971 = vmul.f32 %v1911, 0.5
      %v1972 = vmul.f32 %v1914, 0.5
      %v1973 = vmul.f32 %v1916, 0.5
      %v1974 = vmul.f32 %v1919, 0.5
      %v1975 = vmul.f32 %v1921, 0.5
      %v1976 = vmul.f32 %v1924, 0.5
      %v1977 = vmul.f32 %v1926, 0.5
      %v1978 = vmul.f32 %v1929, 0.5
      %v1979 = vmul.f32 %v1931, 0.5
      %v1980 = vmul.f32 %v1934, 0.5
      %v1981 = vmul.f32 %v1936, 0.5
      %v1982 = vmul.f32 %v1939, 0.5
      %v1983 = vmul.f32 %v1941, 0.5
      %v1984 = vmul.f32 %v1944, 0.5
      %v1985 = vmul.f32 %v1946, 0.5
      %v1986 = vmul.f32 %v1949, 0.5
      %v1987 = vmul.f32 %v1951, 0.5
      %v1988 = vmul.f32 %v1954, 0.5
      %v1989 = vmul.f32 %v1956, 0.5
      %v1990 = vtanh.pop %v1958
      %v1991 = vtanh.pop %v1959
      %v1992 = vtanh.pop %v1960
      %v1993 = vtanh.pop %v1961
      %v1994 = vtanh.pop %v1962
      %v1995 = vtanh.pop %v1963
      %v1996 = vtanh.pop %v1964
      %v1997 = vtanh.pop %v1965
      %v1998 = vtanh.pop %v1966
      %v1999 = vtanh.pop %v1967
      %v2000 = vtanh.pop %v1968
      %v2001 = vtanh.pop %v1969
      %v2002 = vtanh.pop %v1970
      %v2003 = vtanh.pop %v1971
      %v2004 = vtanh.pop %v1972
      %v2005 = vtanh.pop %v1973
      %v2006 = vtanh.pop %v1974
      %v2007 = vtanh.pop %v1975
      %v2008 = vtanh.pop %v1976
      %v2009 = vtanh.pop %v1977
      %v2010 = vtanh.pop %v1978
      %v2011 = vtanh.pop %v1979
      %v2012 = vtanh.pop %v1980
      %v2013 = vtanh.pop %v1981
      %v2014 = vtanh.pop %v1982
      %v2015 = vtanh.pop %v1983
      %v2016 = vtanh.pop %v1984
      %v2017 = vtanh.pop %v1985
      %v2018 = vtanh.pop %v1986
      %v2019 = vtanh.pop %v1987
      %v2020 = vtanh.pop %v1988
      %v2021 = vtanh.pop %v1989
      %v2022 = vmul.f32 %v1990, 0.5
      %v2023 = vmul.f32 %v1991, 0.5
      %v2024 = vmul.f32 %v1992, 0.5
      %v2025 = vmul.f32 %v1993, 0.5
      %v2026 = vmul.f32 %v1994, 0.5
      %v2027 = vmul.f32 %v1995, 0.5
      %v2028 = vmul.f32 %v1996, 0.5
      %v2029 = vmul.f32 %v1997, 0.5
      %v2030 = vmul.f32 %v1998, 0.5
      %v2031 = vmul.f32 %v1999, 0.5
      %v2032 = vmul.f32 %v2000, 0.5
      %v2033 = vmul.f32 %v2001, 0.5
      %v2034 = vmul.f32 %v2002, 0.5
      %v2035 = vmul.f32 %v2003, 0.5
      %v2036 = vmul.f32 %v2004, 0.5
      %v2037 = vmul.f32 %v2005, 0.5
      %v2038 = vmul.f32 %v2006, 0.5
      %v2039 = vmul.f32 %v2007, 0.5
      %v2040 = vmul.f32 %v2008, 0.5
      %v2041 = vmul.f32 %v2009, 0.5
      %v2042 = vmul.f32 %v2010, 0.5
      %v2043 = vmul.f32 %v2011, 0.5
      %v2044 = vmul.f32 %v2012, 0.5
      %v2045 = vmul.f32 %v2013, 0.5
      %v2046 = vmul.f32 %v2014, 0.5
      %v2047 = vmul.f32 %v2015, 0.5
      %v2048 = vmul.f32 %v2016, 0.5
      %v2049 = vmul.f32 %v2017, 0.5
      %v2050 = vmul.f32 %v2018, 0.5
      %v2051 = vmul.f32 %v2019, 0.5
      %v2052 = vmul.f32 %v2020, 0.5
      %v2053 = vmul.f32 %v2021, 0.5
      %v2054 = vadd.f32 %v2022, 0.5
      %v2055 = vadd.f32 %v2023, 0.5
      %v2056 = vadd.f32 %v2024, 0.5
      %v2057 = vadd.f32 %v2025, 0.5
      %v2058 = vadd.f32 %v2026, 0.5
      %v2059 = vadd.f32 %v2027, 0.5
      %v2060 = vadd.f32 %v2028, 0.5
      %v2061 = vadd.f32 %v2029, 0.5
      %v2062 = vadd.f32 %v2030, 0.5
      %v2063 = vadd.f32 %v2031, 0.5
      %v2064 = vadd.f32 %v2032, 0.5
      %v2065 = vadd.f32 %v2033, 0.5
      %v2066 = vadd.f32 %v2034, 0.5
      %v2067 = vadd.f32 %v2035, 0.5
      %v2068 = vadd.f32 %v2036, 0.5
      %v2069 = vadd.f32 %v2037, 0.5
      %v2070 = vadd.f32 %v2038, 0.5
      %v2071 = vadd.f32 %v2039, 0.5
      %v2072 = vadd.f32 %v2040, 0.5
      %v2073 = vadd.f32 %v2041, 0.5
      %v2074 = vadd.f32 %v2042, 0.5
      %v2075 = vadd.f32 %v2043, 0.5
      %v2076 = vadd.f32 %v2044, 0.5
      %v2077 = vadd.f32 %v2045, 0.5
      %v2078 = vadd.f32 %v2046, 0.5
      %v2079 = vadd.f32 %v2047, 0.5
      %v2080 = vadd.f32 %v2048, 0.5
      %v2081 = vadd.f32 %v2049, 0.5
      %v2082 = vadd.f32 %v2050, 0.5
      %v2083 = vadd.f32 %v2051, 0.5
      %v2084 = vadd.f32 %v2052, 0.5
      %v2085 = vadd.f32 %v2053, 0.5
      %v2086 = vmul.f32 %v2054, 0.5
      %v2087 = vmul.f32 %v2055, 0.5
      %v2088 = vmul.f32 %v2056, 0.5
      %v2089 = vmul.f32 %v2057, 0.5
      %v2090 = vmul.f32 %v2058, 0.5
      %v2091 = vmul.f32 %v2059, 0.5
      %v2092 = vmul.f32 %v2060, 0.5
      %v2093 = vmul.f32 %v2061, 0.5
      %v2094 = vmul.f32 %v2062, 0.5
      %v2095 = vmul.f32 %v2063, 0.5
      %v2096 = vmul.f32 %v2064, 0.5
      %v2097 = vmul.f32 %v2065, 0.5
      %v2098 = vmul.f32 %v2066, 0.5
      %v2099 = vmul.f32 %v2067, 0.5
      %v2100 = vmul.f32 %v2068, 0.5
      %v2101 = vmul.f32 %v2069, 0.5
      %v2102 = vmul.f32 %v2070, 0.5
      %v2103 = vmul.f32 %v2071, 0.5
      %v2104 = vmul.f32 %v2072, 0.5
      %v2105 = vmul.f32 %v2073, 0.5
      %v2106 = vmul.f32 %v2074, 0.5
      %v2107 = vmul.f32 %v2075, 0.5
      %v2108 = vmul.f32 %v2076, 0.5
      %v2109 = vmul.f32 %v2077, 0.5
      %v2110 = vmul.f32 %v2078, 0.5
      %v2111 = vmul.f32 %v2079, 0.5
      %v2112 = vmul.f32 %v2080, 0.5
      %v2113 = vmul.f32 %v2081, 0.5
      %v2114 = vmul.f32 %v2082, 0.5
      %v2115 = vmul.f32 %v2083, 0.5
      %v2116 = vmul.f32 %v2084, 0.5
      %v2117 = vmul.f32 %v2085, 0.5
      %v2118 = vtanh.pop %v2086
      %v2119 = vtanh.pop %v2087
      %v2120 = vtanh.pop %v2088
      %v2121 = vtanh.pop %v2089
      %v2122 = vtanh.pop %v2090
      %v2123 = vtanh.pop %v2091
      %v2124 = vtanh.pop %v2092
      %v2125 = vtanh.pop %v2093
      %v2126 = vtanh.pop %v2094
      %v2127 = vtanh.pop %v2095
      %v2128 = vtanh.pop %v2096
      %v2129 = vtanh.pop %v2097
      %v2130 = vtanh.pop %v2098
      %v2131 = vtanh.pop %v2099
      %v2132 = vtanh.pop %v2100
      %v2133 = vtanh.pop %v2101
      %v2134 = vtanh.pop %v2102
      %v2135 = vtanh.pop %v2103
      %v2136 = vtanh.pop %v2104
      %v2137 = vtanh.pop %v2105
      %v2138 = vtanh.pop %v2106
      %v2139 = vtanh.pop %v2107
      %v2140 = vtanh.pop %v2108
      %v2141 = vtanh.pop %v2109
      %v2142 = vtanh.pop %v2110
      %v2143 = vtanh.pop %v2111
      %v2144 = vtanh.pop %v2112
      %v2145 = vtanh.pop %v2113
      %v2146 = vtanh.pop %v2114
      %v2147 = vtanh.pop %v2115
      %v2148 = vtanh.pop %v2116
      %v2149 = vtanh.pop %v2117
      %v2150 = vmul.f32 %v2118, 0.5
      %v2151 = vmul.f32 %v2119, 0.5
      %v2152 = vmul.f32 %v2120, 0.5
      %v2153 = vmul.f32 %v2121, 0.5
      %v2154 = vmul.f32 %v2122, 0.5
      %v2155 = vmul.f32 %v2123, 0.5
      %v2156 = vmul.f32 %v2124, 0.5
      %v2157 = vmul.f32 %v2125, 0.5
      %v2158 = vmul.f32 %v2126, 0.5
      %v2159 = vmul.f32 %v2127, 0.5
      %v2160 = vmul.f32 %v2128, 0.5
      %v2161 = vmul.f32 %v2129, 0.5
      %v2162 = vmul.f32 %v2130, 0.5
      %v2163 = vmul.f32 %v2131, 0.5
      %v2164 = vmul.f32 %v2132, 0.5
      %v2165 = vmul.f32 %v2133, 0.5
      %v2166 = vmul.f32 %v2134, 0.5
      %v2167 = vmul.f32 %v2135, 0.5
      %v2168 = vmul.f32 %v2136, 0.5
      %v2169 = vmul.f32 %v2137, 0.5
      %v2170 = vmul.f32 %v2138, 0.5
      %v2171 = vmul.f32 %v2139, 0.5
      %v2172 = vmul.f32 %v2140, 0.5
      %v2173 = vmul.f32 %v2141, 0.5
      %v2174 = vmul.f32 %v2142, 0.5
      %v2175 = vmul.f32 %v2143, 0.5
      %v2176 = vmul.f32 %v2144, 0.5
      %v2177 = vmul.f32 %v2145, 0.5
      %v2178 = vmul.f32 %v2146, 0.5
      %v2179 = vmul.f32 %v2147, 0.5
      %v2180 = vmul.f32 %v2148, 0.5
      %v2181 = vmul.f32 %v2149, 0.5
      %v2182 = vadd.f32 %v2150, 0.5
      %v2183 = vadd.f32 %v2151, 0.5
      %v2184 = vadd.f32 %v2152, 0.5
      %v2185 = vadd.f32 %v2153, 0.5
      %v2186 = vadd.f32 %v2154, 0.5
      %v2187 = vadd.f32 %v2155, 0.5
      %v2188 = vadd.f32 %v2156, 0.5
      %v2189 = vadd.f32 %v2157, 0.5
      %v2190 = vadd.f32 %v2158, 0.5
      %v2191 = vadd.f32 %v2159, 0.5
      %v2192 = vadd.f32 %v2160, 0.5
      %v2193 = vadd.f32 %v2161, 0.5
      %v2194 = vadd.f32 %v2162, 0.5
      %v2195 = vadd.f32 %v2163, 0.5
      %v2196 = vadd.f32 %v2164, 0.5
      %v2197 = vadd.f32 %v2165, 0.5
      %v2198 = vadd.f32 %v2166, 0.5
      %v2199 = vadd.f32 %v2167, 0.5
      %v2200 = vadd.f32 %v2168, 0.5
      %v2201 = vadd.f32 %v2169, 0.5
      %v2202 = vadd.f32 %v2170, 0.5
      %v2203 = vadd.f32 %v2171, 0.5
      %v2204 = vadd.f32 %v2172, 0.5
      %v2205 = vadd.f32 %v2173, 0.5
      %v2206 = vadd.f32 %v2174, 0.5
      %v2207 = vadd.f32 %v2175, 0.5
      %v2208 = vadd.f32 %v2176, 0.5
      %v2209 = vadd.f32 %v2177, 0.5
      %v2210 = vadd.f32 %v2178, 0.5
      %v2211 = vadd.f32 %v2179, 0.5
      %v2212 = vadd.f32 %v2180, 0.5
      %v2213 = vadd.f32 %v2181, 0.5
      %v2214 = vpack.c.bf16 %v2182, %v2182
      %v2215 = vpack.c.bf16 %v2183, %v2183
      %v2216 = vpack.c.bf16 %v2184, %v2184
      %v2217 = vpack.c.bf16 %v2185, %v2185
      %v2218 = vpack.c.bf16 %v2186, %v2186
      %v2219 = vpack.c.bf16 %v2187, %v2187
      %v2220 = vpack.c.bf16 %v2188, %v2188
      %v2221 = vpack.c.bf16 %v2189, %v2189
      %v2222 = vpack.c.bf16 %v2190, %v2190
      %v2223 = vpack.c.bf16 %v2191, %v2191
      %v2224 = vpack.c.bf16 %v2192, %v2192
      %v2225 = vpack.c.bf16 %v2193, %v2193
      %v2226 = vpack.c.bf16 %v2194, %v2194
      %v2227 = vpack.c.bf16 %v2195, %v2195
      %v2228 = vpack.c.bf16 %v2196, %v2196
      %v2229 = vpack.c.bf16 %v2197, %v2197
      %v2230 = vpack.c.bf16 %v2198, %v2198
      %v2231 = vpack.c.bf16 %v2199, %v2199
      %v2232 = vpack.c.bf16 %v2200, %v2200
      %v2233 = vpack.c.bf16 %v2201, %v2201
      %v2234 = vpack.c.bf16 %v2202, %v2202
      %v2235 = vpack.c.bf16 %v2203, %v2203
      %v2236 = vpack.c.bf16 %v2204, %v2204
      %v2237 = vpack.c.bf16 %v2205, %v2205
      %v2238 = vpack.c.bf16 %v2206, %v2206
      %v2239 = vpack.c.bf16 %v2207, %v2207
      %v2240 = vpack.c.bf16 %v2208, %v2208
      %v2241 = vpack.c.bf16 %v2209, %v2209
      %v2242 = vpack.c.bf16 %v2210, %v2210
      %v2243 = vpack.c.bf16 %v2211, %v2211
      %v2244 = vpack.c.bf16 %v2212, %v2212
      %v2245 = vpack.c.bf16 %v2213, %v2213
      %v2246 = vunpack.c.l.bf16 %v1468
      %v2247 = vunpack.c.l.bf16 %v1469
      %v2248 = vunpack.c.l.bf16 %v1470
      %v2249 = vunpack.c.l.bf16 %v1471
      %v2250 = vunpack.c.l.bf16 %v1472
      %v2251 = vunpack.c.l.bf16 %v1473
      %v2252 = vunpack.c.l.bf16 %v1474
      %v2253 = vunpack.c.l.bf16 %v1475
      %v2254 = vunpack.c.l.bf16 %v1476
      %v2255 = vunpack.c.l.bf16 %v1477
      %v2256 = vunpack.c.l.bf16 %v1478
      %v2257 = vunpack.c.l.bf16 %v1479
      %v2258 = vunpack.c.l.bf16 %v1480
      %v2259 = vunpack.c.l.bf16 %v1481
      %v2260 = vunpack.c.l.bf16 %v1482
      %v2261 = vunpack.c.l.bf16 %v1483
      %v2262 = vunpack.c.l.bf16 %v1484
      %v2263 = vunpack.c.l.bf16 %v1485
      %v2264 = vunpack.c.l.bf16 %v1486
      %v2265 = vunpack.c.l.bf16 %v1487
      %v2266 = vunpack.c.l.bf16 %v1488
      %v2267 = vunpack.c.l.bf16 %v1489
      %v2268 = vunpack.c.l.bf16 %v1490
      %v2269 = vunpack.c.l.bf16 %v1491
      %v2270 = vunpack.c.l.bf16 %v1492
      %v2271 = vunpack.c.l.bf16 %v1493
      %v2272 = vunpack.c.l.bf16 %v1494
      %v2273 = vunpack.c.l.bf16 %v1495
      %v2274 = vunpack.c.l.bf16 %v1496
      %v2275 = vunpack.c.l.bf16 %v1497
      %v2276 = vunpack.c.l.bf16 %v1498
      %v2277 = vunpack.c.l.bf16 %v1499
      %v2278 = vunpack.c.l.bf16 %v2214
      %v2279 = vunpack.c.l.bf16 %v2215
      %v2280 = vunpack.c.l.bf16 %v2216
      %v2281 = vunpack.c.l.bf16 %v2217
      %v2282 = vunpack.c.l.bf16 %v2218
      %v2283 = vunpack.c.l.bf16 %v2219
      %v2284 = vunpack.c.l.bf16 %v2220
      %v2285 = vunpack.c.l.bf16 %v2221
      %v2286 = vunpack.c.l.bf16 %v2222
      %v2287 = vunpack.c.l.bf16 %v2223
      %v2288 = vunpack.c.l.bf16 %v2224
      %v2289 = vunpack.c.l.bf16 %v2225
      %v2290 = vunpack.c.l.bf16 %v2226
      %v2291 = vunpack.c.l.bf16 %v2227
      %v2292 = vunpack.c.l.bf16 %v2228
      %v2293 = vunpack.c.l.bf16 %v2229
      %v2294 = vunpack.c.l.bf16 %v2230
      %v2295 = vunpack.c.l.bf16 %v2231
      %v2296 = vunpack.c.l.bf16 %v2232
      %v2297 = vunpack.c.l.bf16 %v2233
      %v2298 = vunpack.c.l.bf16 %v2234
      %v2299 = vunpack.c.l.bf16 %v2235
      %v2300 = vunpack.c.l.bf16 %v2236
      %v2301 = vunpack.c.l.bf16 %v2237
      %v2302 = vunpack.c.l.bf16 %v2238
      %v2303 = vunpack.c.l.bf16 %v2239
      %v2304 = vunpack.c.l.bf16 %v2240
      %v2305 = vunpack.c.l.bf16 %v2241
      %v2306 = vunpack.c.l.bf16 %v2242
      %v2307 = vunpack.c.l.bf16 %v2243
      %v2308 = vunpack.c.l.bf16 %v2244
      %v2309 = vunpack.c.l.bf16 %v2245
      %v2310 = vmul.f32 %v2246, %v2278
      %v2311 = vmul.f32 %v2247, %v2279
      %v2312 = vmul.f32 %v2248, %v2280
      %v2313 = vmul.f32 %v2249, %v2281
      %v2314 = vmul.f32 %v2250, %v2282
      %v2315 = vmul.f32 %v2251, %v2283
      %v2316 = vmul.f32 %v2252, %v2284
      %v2317 = vmul.f32 %v2253, %v2285
      %v2318 = vmul.f32 %v2254, %v2286
      %v2319 = vmul.f32 %v2255, %v2287
      %v2320 = vmul.f32 %v2256, %v2288
      %v2321 = vmul.f32 %v2257, %v2289
      %v2322 = vmul.f32 %v2258, %v2290
      %v2323 = vmul.f32 %v2259, %v2291
      %v2324 = vmul.f32 %v2260, %v2292
      %v2325 = vmul.f32 %v2261, %v2293
      %v2326 = vmul.f32 %v2262, %v2294
      %v2327 = vmul.f32 %v2263, %v2295
      %v2328 = vmul.f32 %v2264, %v2296
      %v2329 = vmul.f32 %v2265, %v2297
      %v2330 = vmul.f32 %v2266, %v2298
      %v2331 = vmul.f32 %v2267, %v2299
      %v2332 = vmul.f32 %v2268, %v2300
      %v2333 = vmul.f32 %v2269, %v2301
      %v2334 = vmul.f32 %v2270, %v2302
      %v2335 = vmul.f32 %v2271, %v2303
      %v2336 = vmul.f32 %v2272, %v2304
      %v2337 = vmul.f32 %v2273, %v2305
      %v2338 = vmul.f32 %v2274, %v2306
      %v2339 = vmul.f32 %v2275, %v2307
      %v2340 = vmul.f32 %v2276, %v2308
      %v2341 = vmul.f32 %v2277, %v2309
      %v2342 = vpack.c.bf16 %v2311, %v2310
      %v2343 = vpack.c.bf16 %v2313, %v2312
      %v2344 = vpack.c.bf16 %v2315, %v2314
      %v2345 = vpack.c.bf16 %v2317, %v2316
      %v2346 = vpack.c.bf16 %v2319, %v2318
      %v2347 = vpack.c.bf16 %v2321, %v2320
      %v2348 = vpack.c.bf16 %v2323, %v2322
      %v2349 = vpack.c.bf16 %v2325, %v2324
      %v2350 = vpack.c.bf16 %v2327, %v2326
      %v2351 = vpack.c.bf16 %v2329, %v2328
      %v2352 = vpack.c.bf16 %v2331, %v2330
      %v2353 = vpack.c.bf16 %v2333, %v2332
      %v2354 = vpack.c.bf16 %v2335, %v2334
      %v2355 = vpack.c.bf16 %v2337, %v2336
      %v2356 = vpack.c.bf16 %v2339, %v2338
      %v2357 = vpack.c.bf16 %v2341, %v2340
      %v2358 = vld [vmem:[%s9] sm:$0xf]
      %v2359 = vld [vmem:[%s9 + $0x4] sm:$0xf]
      %v2360 = vld [vmem:[%s9 + $0x8] sm:$0xf]
      %v2361 = vld [vmem:[%s9 + $0xc] sm:$0xf]
      %v2362 = vld [vmem:[%s9 + $0x10] sm:$0xf]
      %v2363 = vld [vmem:[%s9 + $0x14] sm:$0xf]
      %v2364 = vld [vmem:[%s9 + $0x18] sm:$0xf]
      %v2365 = vld [vmem:[%s9 + $0x1c] sm:$0xf]
      %v2366 = vld [vmem:[%s9 + $0x20] sm:$0xf]
      %v2367 = vld [vmem:[%s9 + $0x24] sm:$0xf]
      %v2368 = vld [vmem:[%s9 + $0x28] sm:$0xf]
      %v2369 = vld [vmem:[%s9 + $0x2c] sm:$0xf]
      %v2370 = vld [vmem:[%s9 + $0x30] sm:$0xf]
      %v2371 = vld [vmem:[%s9 + $0x34] sm:$0xf]
      %v2372 = vld [vmem:[%s9 + $0x38] sm:$0xf]
      %v2373 = vld [vmem:[%s9 + $0x3c] sm:$0xf]
      %v2374 = vld [vmem:[%s10] sm:$0x1]
      %v2376 = vperm.slane %v2374, 0
      %v2394 = vunpack.c.l.b16 %v2358
      %v2395 = vunpack.c.l.b16 %v2359
      %v2396 = vunpack.c.l.b16 %v2360
      %v2397 = vunpack.c.l.b16 %v2361
      %v2398 = vunpack.c.l.b16 %v2362
      %v2399 = vunpack.c.l.b16 %v2363
      %v2400 = vunpack.c.l.b16 %v2364
      %v2401 = vunpack.c.l.b16 %v2365
      %v2402 = vunpack.c.l.b16 %v2366
      %v2403 = vunpack.c.l.b16 %v2367
      %v2404 = vunpack.c.l.b16 %v2368
      %v2405 = vunpack.c.l.b16 %v2369
      %v2406 = vunpack.c.l.b16 %v2370
      %v2407 = vunpack.c.l.b16 %v2371
      %v2408 = vunpack.c.l.b16 %v2372
      %v2409 = vunpack.c.l.b16 %v2373
      %v2410 = vpack.c.b16 %v2395, %v2394
      %v2411 = vpack.c.b16 %v2397, %v2396
      %v2412 = vpack.c.b16 %v2399, %v2398
      %v2413 = vpack.c.b16 %v2401, %v2400
      %v2414 = vpack.c.b16 %v2403, %v2402
      %v2415 = vpack.c.b16 %v2405, %v2404
      %v2416 = vpack.c.b16 %v2407, %v2406
      %v2417 = vpack.c.b16 %v2409, %v2408
      %2426 = vmatpush.bf16.msra.mxu0 %v2417
      %2427 = vmatpush.bf16.msra.mxu0 %v2416
      %2428 = vmatpush.bf16.msra.mxu0 %v2415
      %2429 = vmatpush.bf16.msra.mxu0 %v2414
      %2430 = vmatpush.bf16.msra.mxu0 %v2413
      %2431 = vmatpush.bf16.msra.mxu0 %v2412
      %2432 = vmatpush.bf16.msra.mxu0 %v2411
      %2433 = vmatpush.bf16.msra.mxu0 %v2410
      %2434 = vmatmul.bf16.gmra.mxu0 %v2342
      %v2435 = vpop.f32.mrf.mxu0
      %v2436 = vadd.f32 %v2376, %v2435
      %v2437 = vpop.f32.mrf.mxu0
      %v2438 = vadd.f32 %v2376, %v2437
      %2439 = vmatmul.bf16.gmra.mxu0 %v2343
      %v2440 = vpop.f32.mrf.mxu0
      %v2441 = vadd.f32 %v2376, %v2440
      %v2442 = vpop.f32.mrf.mxu0
      %v2443 = vadd.f32 %v2376, %v2442
      %2444 = vmatmul.bf16.gmra.mxu0 %v2344
      %v2445 = vpop.f32.mrf.mxu0
      %v2446 = vadd.f32 %v2376, %v2445
      %v2447 = vpop.f32.mrf.mxu0
      %v2448 = vadd.f32 %v2376, %v2447
      %2449 = vmatmul.bf16.gmra.mxu0 %v2345
      %v2450 = vpop.f32.mrf.mxu0
      %v2451 = vadd.f32 %v2376, %v2450
      %v2452 = vpop.f32.mrf.mxu0
      %v2453 = vadd.f32 %v2376, %v2452
      %2454 = vmatmul.bf16.gmra.mxu0 %v2346
      %v2455 = vpop.f32.mrf.mxu0
      %v2456 = vadd.f32 %v2376, %v2455
      %v2457 = vpop.f32.mrf.mxu0
      %v2458 = vadd.f32 %v2376, %v2457
      %2459 = vmatmul.bf16.gmra.mxu0 %v2347
      %v2460 = vpop.f32.mrf.mxu0
      %v2461 = vadd.f32 %v2376, %v2460
      %v2462 = vpop.f32.mrf.mxu0
      %v2463 = vadd.f32 %v2376, %v2462
      %2464 = vmatmul.bf16.gmra.mxu0 %v2348
      %v2465 = vpop.f32.mrf.mxu0
      %v2466 = vadd.f32 %v2376, %v2465
      %v2467 = vpop.f32.mrf.mxu0
      %v2468 = vadd.f32 %v2376, %v2467
      %2469 = vmatmul.bf16.gmra.mxu0 %v2349
      %v2470 = vpop.f32.mrf.mxu0
      %v2471 = vadd.f32 %v2376, %v2470
      %v2472 = vpop.f32.mrf.mxu0
      %v2473 = vadd.f32 %v2376, %v2472
      %2474 = vmatmul.bf16.gmra.mxu0 %v2350
      %v2475 = vpop.f32.mrf.mxu0
      %v2476 = vadd.f32 %v2376, %v2475
      %v2477 = vpop.f32.mrf.mxu0
      %v2478 = vadd.f32 %v2376, %v2477
      %2479 = vmatmul.bf16.gmra.mxu0 %v2351
      %v2480 = vpop.f32.mrf.mxu0
      %v2481 = vadd.f32 %v2376, %v2480
      %v2482 = vpop.f32.mrf.mxu0
      %v2483 = vadd.f32 %v2376, %v2482
      %2484 = vmatmul.bf16.gmra.mxu0 %v2352
      %v2485 = vpop.f32.mrf.mxu0
      %v2486 = vadd.f32 %v2376, %v2485
      %v2487 = vpop.f32.mrf.mxu0
      %v2488 = vadd.f32 %v2376, %v2487
      %2489 = vmatmul.bf16.gmra.mxu0 %v2353
      %v2490 = vpop.f32.mrf.mxu0
      %v2491 = vadd.f32 %v2376, %v2490
      %v2492 = vpop.f32.mrf.mxu0
      %v2493 = vadd.f32 %v2376, %v2492
      %2494 = vmatmul.bf16.gmra.mxu0 %v2354
      %v2495 = vpop.f32.mrf.mxu0
      %v2496 = vadd.f32 %v2376, %v2495
      %v2497 = vpop.f32.mrf.mxu0
      %v2498 = vadd.f32 %v2376, %v2497
      %2499 = vmatmul.bf16.gmra.mxu0 %v2355
      %v2500 = vpop.f32.mrf.mxu0
      %v2501 = vadd.f32 %v2376, %v2500
      %v2502 = vpop.f32.mrf.mxu0
      %v2503 = vadd.f32 %v2376, %v2502
      %2504 = vmatmul.bf16.gmra.mxu0 %v2356
      %v2505 = vpop.f32.mrf.mxu0
      %v2506 = vadd.f32 %v2376, %v2505
      %v2507 = vpop.f32.mrf.mxu0
      %v2508 = vadd.f32 %v2376, %v2507
      %2509 = vmatmul.bf16.gmra.mxu0 %v2357
      %v2510 = vpop.f32.mrf.mxu0
      %v2511 = vadd.f32 %v2376, %v2510
      %v2512 = vpop.f32.mrf.mxu0
      %v2513 = vadd.f32 %v2376, %v2512
      %2514 = vdwg.mxu0
      %vm2515 = vcmp.gt.f32.partialorder %v2436, 0.0
      %vm2516 = vcmp.gt.f32.partialorder %v2438, 0.0
      %vm2517 = vcmp.gt.f32.partialorder %v2441, 0.0
      %vm2518 = vcmp.gt.f32.partialorder %v2443, 0.0
      %vm2519 = vcmp.gt.f32.partialorder %v2446, 0.0
      %vm2520 = vcmp.gt.f32.partialorder %v2448, 0.0
      %vm2521 = vcmp.gt.f32.partialorder %v2451, 0.0
      %vm2522 = vcmp.gt.f32.partialorder %v2453, 0.0
      %vm2523 = vcmp.gt.f32.partialorder %v2456, 0.0
      %vm2524 = vcmp.gt.f32.partialorder %v2458, 0.0
      %vm2525 = vcmp.gt.f32.partialorder %v2461, 0.0
      %vm2526 = vcmp.gt.f32.partialorder %v2463, 0.0
      %vm2527 = vcmp.gt.f32.partialorder %v2466, 0.0
      %vm2528 = vcmp.gt.f32.partialorder %v2468, 0.0
      %vm2529 = vcmp.gt.f32.partialorder %v2471, 0.0
      %vm2530 = vcmp.gt.f32.partialorder %v2473, 0.0
      %vm2531 = vcmp.gt.f32.partialorder %v2476, 0.0
      %vm2532 = vcmp.gt.f32.partialorder %v2478, 0.0
      %vm2533 = vcmp.gt.f32.partialorder %v2481, 0.0
      %vm2534 = vcmp.gt.f32.partialorder %v2483, 0.0
      %vm2535 = vcmp.gt.f32.partialorder %v2486, 0.0
      %vm2536 = vcmp.gt.f32.partialorder %v2488, 0.0
      %vm2537 = vcmp.gt.f32.partialorder %v2491, 0.0
      %vm2538 = vcmp.gt.f32.partialorder %v2493, 0.0
      %vm2539 = vcmp.gt.f32.partialorder %v2496, 0.0
      %vm2540 = vcmp.gt.f32.partialorder %v2498, 0.0
      %vm2541 = vcmp.gt.f32.partialorder %v2501, 0.0
      %vm2542 = vcmp.gt.f32.partialorder %v2503, 0.0
      %vm2543 = vcmp.gt.f32.partialorder %v2506, 0.0
      %vm2544 = vcmp.gt.f32.partialorder %v2508, 0.0
      %vm2545 = vcmp.gt.f32.partialorder %v2511, 0.0
      %vm2546 = vcmp.gt.f32.partialorder %v2513, 0.0
      %v2547 = vmul.f32 %v2436, 0.2
      %v2548 = vmul.f32 %v2438, 0.2
      %v2549 = vmul.f32 %v2441, 0.2
      %v2550 = vmul.f32 %v2443, 0.2
      %v2551 = vmul.f32 %v2446, 0.2
      %v2552 = vmul.f32 %v2448, 0.2
      %v2553 = vmul.f32 %v2451, 0.2
      %v2554 = vmul.f32 %v2453, 0.2
      %v2555 = vmul.f32 %v2456, 0.2
      %v2556 = vmul.f32 %v2458, 0.2
      %v2557 = vmul.f32 %v2461, 0.2
      %v2558 = vmul.f32 %v2463, 0.2
      %v2559 = vmul.f32 %v2466, 0.2
      %v2560 = vmul.f32 %v2468, 0.2
      %v2561 = vmul.f32 %v2471, 0.2
      %v2562 = vmul.f32 %v2473, 0.2
      %v2563 = vmul.f32 %v2476, 0.2
      %v2564 = vmul.f32 %v2478, 0.2
      %v2565 = vmul.f32 %v2481, 0.2
      %v2566 = vmul.f32 %v2483, 0.2
      %v2567 = vmul.f32 %v2486, 0.2
      %v2568 = vmul.f32 %v2488, 0.2
      %v2569 = vmul.f32 %v2491, 0.2
      %v2570 = vmul.f32 %v2493, 0.2
      %v2571 = vmul.f32 %v2496, 0.2
      %v2572 = vmul.f32 %v2498, 0.2
      %v2573 = vmul.f32 %v2501, 0.2
      %v2574 = vmul.f32 %v2503, 0.2
      %v2575 = vmul.f32 %v2506, 0.2
      %v2576 = vmul.f32 %v2508, 0.2
      %v2577 = vmul.f32 %v2511, 0.2
      %v2578 = vmul.f32 %v2513, 0.2
      %v2579 = vsel %vm2515, %v2436, %v2547
      %v2580 = vsel %vm2516, %v2438, %v2548
      %v2581 = vsel %vm2517, %v2441, %v2549
      %v2582 = vsel %vm2518, %v2443, %v2550
      %v2583 = vsel %vm2519, %v2446, %v2551
      %v2584 = vsel %vm2520, %v2448, %v2552
      %v2585 = vsel %vm2521, %v2451, %v2553
      %v2586 = vsel %vm2522, %v2453, %v2554
      %v2587 = vsel %vm2523, %v2456, %v2555
      %v2588 = vsel %vm2524, %v2458, %v2556
      %v2589 = vsel %vm2525, %v2461, %v2557
      %v2590 = vsel %vm2526, %v2463, %v2558
      %v2591 = vsel %vm2527, %v2466, %v2559
      %v2592 = vsel %vm2528, %v2468, %v2560
      %v2593 = vsel %vm2529, %v2471, %v2561
      %v2594 = vsel %vm2530, %v2473, %v2562
      %v2595 = vsel %vm2531, %v2476, %v2563
      %v2596 = vsel %vm2532, %v2478, %v2564
      %v2597 = vsel %vm2533, %v2481, %v2565
      %v2598 = vsel %vm2534, %v2483, %v2566
      %v2599 = vsel %vm2535, %v2486, %v2567
      %v2600 = vsel %vm2536, %v2488, %v2568
      %v2601 = vsel %vm2537, %v2491, %v2569
      %v2602 = vsel %vm2538, %v2493, %v2570
      %v2603 = vsel %vm2539, %v2496, %v2571
      %v2604 = vsel %vm2540, %v2498, %v2572
      %v2605 = vsel %vm2541, %v2501, %v2573
      %v2606 = vsel %vm2542, %v2503, %v2574
      %v2607 = vsel %vm2543, %v2506, %v2575
      %v2608 = vsel %vm2544, %v2508, %v2576
      %v2609 = vsel %vm2545, %v2511, %v2577
      %v2610 = vsel %vm2546, %v2513, %v2578
      %v2611 = vpack.c.bf16 %v2580, %v2579
      %v2612 = vpack.c.bf16 %v2582, %v2581
      %v2613 = vpack.c.bf16 %v2584, %v2583
      %v2614 = vpack.c.bf16 %v2586, %v2585
      %v2615 = vpack.c.bf16 %v2588, %v2587
      %v2616 = vpack.c.bf16 %v2590, %v2589
      %v2617 = vpack.c.bf16 %v2592, %v2591
      %v2618 = vpack.c.bf16 %v2594, %v2593
      %v2619 = vpack.c.bf16 %v2596, %v2595
      %v2620 = vpack.c.bf16 %v2598, %v2597
      %v2621 = vpack.c.bf16 %v2600, %v2599
      %v2622 = vpack.c.bf16 %v2602, %v2601
      %v2623 = vpack.c.bf16 %v2604, %v2603
      %v2624 = vpack.c.bf16 %v2606, %v2605
      %v2625 = vpack.c.bf16 %v2608, %v2607
      %v2626 = vpack.c.bf16 %v2610, %v2609
      %v2627 = vld [vmem:[%s11] sm:$0xf]
      %v2628 = vld [vmem:[%s11 + $0x4] sm:$0xf]
      %v2629 = vld [vmem:[%s11 + $0x8] sm:$0xf]
      %v2630 = vld [vmem:[%s11 + $0xc] sm:$0xf]
      %v2631 = vld [vmem:[%s11 + $0x10] sm:$0xf]
      %v2632 = vld [vmem:[%s11 + $0x14] sm:$0xf]
      %v2633 = vld [vmem:[%s11 + $0x18] sm:$0xf]
      %v2634 = vld [vmem:[%s11 + $0x1c] sm:$0xf]
      %v2635 = vld [vmem:[%s11 + $0x20] sm:$0xf]
      %v2636 = vld [vmem:[%s11 + $0x24] sm:$0xf]
      %v2637 = vld [vmem:[%s11 + $0x28] sm:$0xf]
      %v2638 = vld [vmem:[%s11 + $0x2c] sm:$0xf]
      %v2639 = vld [vmem:[%s11 + $0x30] sm:$0xf]
      %v2640 = vld [vmem:[%s11 + $0x34] sm:$0xf]
      %v2641 = vld [vmem:[%s11 + $0x38] sm:$0xf]
      %v2642 = vld [vmem:[%s11 + $0x3c] sm:$0xf]
      %v2643 = vld [vmem:[%s12] sm:$0x1]
      %v2645 = vperm.slane %v2643, 0
      %v2663 = vunpack.c.l.b16 %v2627
      %v2664 = vunpack.c.l.b16 %v2628
      %v2665 = vunpack.c.l.b16 %v2629
      %v2666 = vunpack.c.l.b16 %v2630
      %v2667 = vunpack.c.l.b16 %v2631
      %v2668 = vunpack.c.l.b16 %v2632
      %v2669 = vunpack.c.l.b16 %v2633
      %v2670 = vunpack.c.l.b16 %v2634
      %v2671 = vunpack.c.l.b16 %v2635
      %v2672 = vunpack.c.l.b16 %v2636
      %v2673 = vunpack.c.l.b16 %v2637
      %v2674 = vunpack.c.l.b16 %v2638
      %v2675 = vunpack.c.l.b16 %v2639
      %v2676 = vunpack.c.l.b16 %v2640
      %v2677 = vunpack.c.l.b16 %v2641
      %v2678 = vunpack.c.l.b16 %v2642
      %v2679 = vpack.c.b16 %v2664, %v2663
      %v2680 = vpack.c.b16 %v2666, %v2665
      %v2681 = vpack.c.b16 %v2668, %v2667
      %v2682 = vpack.c.b16 %v2670, %v2669
      %v2683 = vpack.c.b16 %v2672, %v2671
      %v2684 = vpack.c.b16 %v2674, %v2673
      %v2685 = vpack.c.b16 %v2676, %v2675
      %v2686 = vpack.c.b16 %v2678, %v2677
      %2695 = vmatpush.bf16.msra.mxu0 %v2686
      %2696 = vmatpush.bf16.msra.mxu0 %v2685
      %2697 = vmatpush.bf16.msra.mxu0 %v2684
      %2698 = vmatpush.bf16.msra.mxu0 %v2683
      %2699 = vmatpush.bf16.msra.mxu0 %v2682
      %2700 = vmatpush.bf16.msra.mxu0 %v2681
      %2701 = vmatpush.bf16.msra.mxu0 %v2680
      %2702 = vmatpush.bf16.msra.mxu0 %v2679
      %2703 = vmatmul.bf16.gmra.mxu0 %v2611
      %v2704 = vpop.f32.mrf.mxu0
      %v2705 = vadd.f32 %v2645, %v2704
      %v2706 = vpop.f32.mrf.mxu0
      %v2707 = vadd.f32 %v2645, %v2706
      %2708 = vmatmul.bf16.gmra.mxu0 %v2612
      %v2709 = vpop.f32.mrf.mxu0
      %v2710 = vadd.f32 %v2645, %v2709
      %v2711 = vpop.f32.mrf.mxu0
      %v2712 = vadd.f32 %v2645, %v2711
      %2713 = vmatmul.bf16.gmra.mxu0 %v2613
      %v2714 = vpop.f32.mrf.mxu0
      %v2715 = vadd.f32 %v2645, %v2714
      %v2716 = vpop.f32.mrf.mxu0
      %v2717 = vadd.f32 %v2645, %v2716
      %2718 = vmatmul.bf16.gmra.mxu0 %v2614
      %v2719 = vpop.f32.mrf.mxu0
      %v2720 = vadd.f32 %v2645, %v2719
      %v2721 = vpop.f32.mrf.mxu0
      %v2722 = vadd.f32 %v2645, %v2721
      %2723 = vmatmul.bf16.gmra.mxu0 %v2615
      %v2724 = vpop.f32.mrf.mxu0
      %v2725 = vadd.f32 %v2645, %v2724
      %v2726 = vpop.f32.mrf.mxu0
      %v2727 = vadd.f32 %v2645, %v2726
      %2728 = vmatmul.bf16.gmra.mxu0 %v2616
      %v2729 = vpop.f32.mrf.mxu0
      %v2730 = vadd.f32 %v2645, %v2729
      %v2731 = vpop.f32.mrf.mxu0
      %v2732 = vadd.f32 %v2645, %v2731
      %2733 = vmatmul.bf16.gmra.mxu0 %v2617
      %v2734 = vpop.f32.mrf.mxu0
      %v2735 = vadd.f32 %v2645, %v2734
      %v2736 = vpop.f32.mrf.mxu0
      %v2737 = vadd.f32 %v2645, %v2736
      %2738 = vmatmul.bf16.gmra.mxu0 %v2618
      %v2739 = vpop.f32.mrf.mxu0
      %v2740 = vadd.f32 %v2645, %v2739
      %v2741 = vpop.f32.mrf.mxu0
      %v2742 = vadd.f32 %v2645, %v2741
      %2743 = vmatmul.bf16.gmra.mxu0 %v2619
      %v2744 = vpop.f32.mrf.mxu0
      %v2745 = vadd.f32 %v2645, %v2744
      %v2746 = vpop.f32.mrf.mxu0
      %v2747 = vadd.f32 %v2645, %v2746
      %2748 = vmatmul.bf16.gmra.mxu0 %v2620
      %v2749 = vpop.f32.mrf.mxu0
      %v2750 = vadd.f32 %v2645, %v2749
      %v2751 = vpop.f32.mrf.mxu0
      %v2752 = vadd.f32 %v2645, %v2751
      %2753 = vmatmul.bf16.gmra.mxu0 %v2621
      %v2754 = vpop.f32.mrf.mxu0
      %v2755 = vadd.f32 %v2645, %v2754
      %v2756 = vpop.f32.mrf.mxu0
      %v2757 = vadd.f32 %v2645, %v2756
      %2758 = vmatmul.bf16.gmra.mxu0 %v2622
      %v2759 = vpop.f32.mrf.mxu0
      %v2760 = vadd.f32 %v2645, %v2759
      %v2761 = vpop.f32.mrf.mxu0
      %v2762 = vadd.f32 %v2645, %v2761
      %2763 = vmatmul.bf16.gmra.mxu0 %v2623
      %v2764 = vpop.f32.mrf.mxu0
      %v2765 = vadd.f32 %v2645, %v2764
      %v2766 = vpop.f32.mrf.mxu0
      %v2767 = vadd.f32 %v2645, %v2766
      %2768 = vmatmul.bf16.gmra.mxu0 %v2624
      %v2769 = vpop.f32.mrf.mxu0
      %v2770 = vadd.f32 %v2645, %v2769
      %v2771 = vpop.f32.mrf.mxu0
      %v2772 = vadd.f32 %v2645, %v2771
      %2773 = vmatmul.bf16.gmra.mxu0 %v2625
      %v2774 = vpop.f32.mrf.mxu0
      %v2775 = vadd.f32 %v2645, %v2774
      %v2776 = vpop.f32.mrf.mxu0
      %v2777 = vadd.f32 %v2645, %v2776
      %2778 = vmatmul.bf16.gmra.mxu0 %v2626
      %v2779 = vpop.f32.mrf.mxu0
      %v2780 = vadd.f32 %v2645, %v2779
      %v2781 = vpop.f32.mrf.mxu0
      %v2782 = vadd.f32 %v2645, %v2781
      %2783 = vdwg.mxu0
      %vm2784 = vcmask 7168
      %2785 = vst.msk [vmem:[%s442] sm:$0xff] %vm2784, %v2705
      %2786 = vst.msk [vmem:[%s442 + $0x8] sm:$0xff] %vm2784, %v2707
      %2787 = vst.msk [vmem:[%s442 + $0x10] sm:$0xff] %vm2784, %v2710
      %2788 = vst.msk [vmem:[%s442 + $0x18] sm:$0xff] %vm2784, %v2712
      %2789 = vst.msk [vmem:[%s442 + $0x20] sm:$0xff] %vm2784, %v2715
      %2790 = vst.msk [vmem:[%s442 + $0x28] sm:$0xff] %vm2784, %v2717
      %2791 = vst.msk [vmem:[%s442 + $0x30] sm:$0xff] %vm2784, %v2720
      %2792 = vst.msk [vmem:[%s442 + $0x38] sm:$0xff] %vm2784, %v2722
      %2793 = vst.msk [vmem:[%s442 + $0x40] sm:$0xff] %vm2784, %v2725
      %2794 = vst.msk [vmem:[%s442 + $0x48] sm:$0xff] %vm2784, %v2727
      %2795 = vst.msk [vmem:[%s442 + $0x50] sm:$0xff] %vm2784, %v2730
      %2796 = vst.msk [vmem:[%s442 + $0x58] sm:$0xff] %vm2784, %v2732
      %2797 = vst.msk [vmem:[%s442 + $0x60] sm:$0xff] %vm2784, %v2735
      %2798 = vst.msk [vmem:[%s442 + $0x68] sm:$0xff] %vm2784, %v2737
      %2799 = vst.msk [vmem:[%s442 + $0x70] sm:$0xff] %vm2784, %v2740
      %2800 = vst.msk [vmem:[%s442 + $0x78] sm:$0xff] %vm2784, %v2742
      %2801 = vst.msk [vmem:[%s442 + $0x80] sm:$0xff] %vm2784, %v2745
      %2802 = vst.msk [vmem:[%s442 + $0x88] sm:$0xff] %vm2784, %v2747
      %2803 = vst.msk [vmem:[%s442 + $0x90] sm:$0xff] %vm2784, %v2750
      %2804 = vst.msk [vmem:[%s442 + $0x98] sm:$0xff] %vm2784, %v2752
      %2805 = vst.msk [vmem:[%s442 + $0xa0] sm:$0xff] %vm2784, %v2755
      %2806 = vst.msk [vmem:[%s442 + $0xa8] sm:$0xff] %vm2784, %v2757
      %2807 = vst.msk [vmem:[%s442 + $0xb0] sm:$0xff] %vm2784, %v2760
      %2808 = vst.msk [vmem:[%s442 + $0xb8] sm:$0xff] %vm2784, %v2762
      %2809 = vst.msk [vmem:[%s442 + $0xc0] sm:$0xff] %vm2784, %v2765
      %2810 = vst.msk [vmem:[%s442 + $0xc8] sm:$0xff] %vm2784, %v2767
      %2811 = vst.msk [vmem:[%s442 + $0xd0] sm:$0xff] %vm2784, %v2770
      %2812 = vst.msk [vmem:[%s442 + $0xd8] sm:$0xff] %vm2784, %v2772
      %2813 = vst.msk [vmem:[%s442 + $0xe0] sm:$0xff] %vm2784, %v2775
      %2814 = vst.msk [vmem:[%s442 + $0xe8] sm:$0xff] %vm2784, %v2777
      %2815 = vst.msk [vmem:[%s442 + $0xf0] sm:$0xff] %vm2784, %v2780
      %2816 = vst.msk [vmem:[%s442 + $0xf8] sm:$0xff] %vm2784, %v2782
      %s2817 = smul.u32 32, %s24
      %p2818 = scmp.lt.s32.totalorder %s2817, 63
      %s2819 = scalar_select %p2818, %s2817, 63
      %s2820 = smul.addr %s2819, 8
      %s2821 = scalar_lea.vmem %s13, %s2820
      // Predicated region
      $region73: #{mlp_classifier_forward.1} parent=71 // pred_check
        %p2822 = pneg %p320
      $region74: #{mlp_classifier_forward.1} parent=71 // pred_check_branch
        %2824 = sbr.rel (%p2822) target = $region76
      $region75: #{mlp_classifier_forward.1} parent=71 // pred_region
        %s2825 = smul.u32 32, %s24
      $region76: #{mlp_classifier_forward.1} parent=71 // pred_fallthru
        _
    $region72: #{mlp_classifier_forward.1} parent=5 // pred_fallthru
      _
    %p2826 = scmp.le.s32.totalorder 2, %s19
    // Predicated region
    $region77: #{mlp_classifier_forward.1} parent=5 // pred_check
      %p2827 = pneg %p2826
    $region78: #{mlp_classifier_forward.1} parent=5 // pred_check_branch
      %2829 = sbr.rel (%p2827) target = $region80
    $region79: #{mlp_classifier_forward.1} parent=5 // pred_region
      %s2830 = ssub.s32 %s19, 2
      // Predicated region
      $region81: #{mlp_classifier_forward.1} parent=79 // pred_check
        %p2831 = pneg %p326
      $region82: #{mlp_classifier_forward.1} parent=79 // pred_check_branch
        %2833 = sbr.rel (%p2831) target = $region84
      $region83: #{mlp_classifier_forward.1} parent=79 // pred_region
        %s2834 = smul.u32 32, %s25
        %p2835 = scmp.lt.s32.totalorder %s2834, 63
        %s2836 = scalar_select %p2835, %s2834, 63
        %s2837 = smul.addr %s2836, 8
        %s2838 = scalar_lea.vmem %s13, %s2837
      $region84: #{mlp_classifier_forward.1} parent=79 // pred_fallthru
        _
    $region80: #{mlp_classifier_forward.1} parent=5 // pred_fallthru
      _
  $region6: #{mlp_classifier_forward.1} parent=0 // loop_footer
    %s23 = sadd.s32 1, %s19
  $region7: #{mlp_classifier_forward.1} parent=0 // loop_footer_branch
    %18 = sbr.rel target = $region3
  $region8: #{mlp_classifier_forward.1} parent=0 // loop_exit
    _

</llo_original>
